<compile_context>
chip_gen: v5e
topology: v5e:2x2
jax: 0.10.0
libtpu: 0.0.40
codegen_flags: <defaults>
</compile_context>

<pallas_src>
import math
import functools

import jax
import jax.numpy as jnp
from jax import lax
from jax.experimental import pallas as pl
from jax.experimental.pallas import tpu as pltpu


NEG_INF = -1e30            # finite "minus infinity" for the running max (no inf arithmetic)
MASK_VALUE = -1000000.0    # matches d2l masked_softmax


def mha_kernel(valid_ref, xq_ref, xk_ref, xv_ref, wq_ref, wk_ref, wv_ref, wo_ref,
               out_ref, q_s, m_s, l_s, acc_s, *, num_heads, head_dim, approx_reciprocal):
    b = pl.program_id(0)
    ki = pl.program_id(2)
    nk = pl.num_programs(2)

    cd = xq_ref.dtype                    # MXU operand dtype (bf16 default, f32 optional)
    tk = xk_ref.shape[1]
    d = head_dim
    valid_len = valid_ref[b]             # per-batch valid length (scalar, SMEM)

    @pl.when(ki == 0)
    def _init():
        # Project Q once per (batch, q-tile); 1/sqrt(d) is already folded into W_q on the host.
        q_s[...] = jnp.dot(xq_ref[0], wq_ref[...],
                           preferred_element_type=jnp.float32).astype(cd)
        m_s[...] = jnp.full(m_s.shape, NEG_INF, dtype=m_s.dtype)
        l_s[...] = jnp.zeros(l_s.shape, dtype=l_s.dtype)
        acc_s[...] = jnp.zeros(acc_s.shape, dtype=acc_s.dtype)

    # Lane-dense projections of the current K/V tile (full H-wide output, weights stay (D,H)).
    # TODO(synk): K/V tiles are re-projected for every q-tile; cache them in scratch when
    # num_q_tiles > 1 and Tk*H fits comfortably in VMEM.
    k = jnp.dot(xk_ref[0], wk_ref[...], preferred_element_type=jnp.float32).astype(cd)
    v = jnp.dot(xv_ref[0], wv_ref[...], preferred_element_type=jnp.float32).astype(cd)

    # masked_softmax semantics: key positions >= valid_len get -1e6 before softmax.
    # (valid_len == 0 degenerates to uniform attention, same as the d2l reference.)
    # Iota is only (1, tk); jnp.where broadcasts it over each (tq, tk) score tile.
    col_ids = ki * tk + lax.broadcasted_iota(jnp.int32, (1, tk), 1)
    col_valid = col_ids < valid_len

    q = q_s[...]                          # (tq, H), loaded once; per-head work uses lane slices
    for h in range(num_heads):            # static unroll; per-head math is unavoidable here
        sl = slice(h * d, (h + 1) * d)
        # Scores: contract the head_dim axes directly (K^T folded into the contraction).
        s = lax.dot_general(q[:, sl], k[:, sl], (((1,), (1,)), ((), ())),
                            preferred_element_type=jnp.float32)            # (tq, tk) f32
        s = jnp.where(col_valid, s, MASK_VALUE)

        # Online-softmax (flash) update of the running max / denominator / context.
        m_prev = m_s[h]                                                     # (tq, 1)
        m_new = jnp.maximum(m_prev, jnp.max(s, axis=-1, keepdims=True))
        alpha = jnp.exp(m_prev - m_new)
        p = jnp.exp(s - m_new)
        l_s[h] = alpha * l_s[h] + jnp.sum(p, axis=-1, keepdims=True)
        m_s[h] = m_new
        pv = jnp.dot(p.astype(cd), v[:, sl], preferred_element_type=jnp.float32)  # (tq, d) f32
        acc_s[:, sl] = alpha * acc_s[:, sl] + pv

    @pl.when(ki == nk - 1)
    def _finalize():
        # Normalize each head in place (acc_s is already in concat-over-heads lane layout),
        # then ONE full-depth (tq,H)@(H,H) output projection — no (nh,Tq,H) partials, no
        # per-head VALU accumulation passes.
        for h in range(num_heads):
            sl = slice(h * d, (h + 1) * d)
            l_h = l_s[h]
            if approx_reciprocal:
                inv = pl.reciprocal(l_h, approx=True)      # EUP slot; co-issues with the MXU
            else:
                inv = 1.0 / l_h                            # exact path for validation
            acc_s[:, sl] = acc_s[:, sl] * inv
        ctx = acc_s[...].astype(cd)                        # (tq, H)
        # TODO(synk): for H not a multiple of 128 this is a masked (partial-lane) store; pad H
        # on the host for a fully lane-dense writeback on v5e if it ever shows in the profile.
        out_ref[0] = jnp.dot(ctx, wo_ref[...],
                             preferred_element_type=jnp.float32).astype(out_ref.dtype)


def multi_head_attention(xq, xk, xv, valid_lens, wq, wk, wv, wo, num_heads, *,
                         compute_dtype=jnp.bfloat16, approx_reciprocal=True,
                         q_tile=128, k_tile=128):
    """Fused MHA forward.  Weights are (in, out); valid_lens is 1-D per-batch (or None).

    compute_dtype: MXU operand dtype.  bf16 is the default on all TPU generations (the MXU is
    bf16-native everywhere); softmax math and matmul accumulation stay f32 in-kernel.
    approx_reciprocal: use the EUP approximate reciprocal for the softmax denominator.
    """
    B, Tq, D = xq.shape
    _, Tk, _ = xk.shape
    H = wq.shape[1]
    assert H % num_heads == 0
    head_dim = H // num_heads
    out_dtype = xq.dtype

    if valid_lens is None:
        valid_lens = jnp.full((B,), Tk, dtype=jnp.int32)
    valid_lens = valid_lens.astype(jnp.int32)
    # TODO(synk): 2-D (per-query) valid_lens, window_mask, and attention dropout not implemented.

    cd = jnp.dtype(compute_dtype) if compute_dtype is not None else jnp.dtype(xq.dtype)

    # Fold 1/sqrt(head_dim) into W_q once on the host (one-time, free).
    wq_scaled = wq * (1.0 / math.sqrt(head_dim))

    xq_, xk_, xv_ = (t.astype(cd) for t in (xq, xk, xv))
    wq_, wk_, wv_, wo_ = (t.astype(cd) for t in (wq_scaled, wk, wv, wo))

    # Flash-style sequence tiling: the q axis is 'parallel' (feeds both v7x TensorCores even at
    # B == 1 once Tq > q_tile); the kv axis carries the online-softmax recurrence ('arbitrary').
    tq = Tq if Tq <= q_tile else q_tile
    tk = Tk if Tk <= k_tile else k_tile
    assert Tq % tq == 0 and Tk % tk == 0, "sequence lengths must divide the tile sizes"
    nq, nk = Tq // tq, Tk // tk

    kernel = functools.partial(mha_kernel, num_heads=num_heads, head_dim=head_dim,
                               approx_reciprocal=approx_reciprocal)

    def weight_spec(shape):
        # Constant index_map -> the block never changes; single-buffer it to halve weight VMEM.
        return pl.BlockSpec(shape, lambda b, qi, ki, vl: (0, 0),
                            pipeline_mode=pl.Buffered(buffer_count=1))

    grid_spec = pltpu.PrefetchScalarGridSpec(
        num_scalar_prefetch=1,                                              # valid_lens -> SMEM
        grid=(B, nq, nk),
        in_specs=[
            pl.BlockSpec((1, tq, D), lambda b, qi, ki, vl: (b, qi, 0)),     # queries
            pl.BlockSpec((1, tk, D), lambda b, qi, ki, vl: (b, ki, 0)),     # keys
            pl.BlockSpec((1, tk, D), lambda b, qi, ki, vl: (b, ki, 0)),     # values
            weight_spec((D, H)),                                            # W_q (pre-scaled)
            weight_spec((D, H)),                                            # W_k
            weight_spec((D, H)),                                            # W_v
            weight_spec((H, H)),                                            # W_o
        ],
        out_specs=pl.BlockSpec((1, tq, H), lambda b, qi, ki, vl: (b, qi, 0)),
        scratch_shapes=[
            pltpu.VMEM((tq, H), cd),                        # projected (pre-scaled) Q
            pltpu.VMEM((num_heads, tq, 1), jnp.float32),    # running max  m
            pltpu.VMEM((num_heads, tq, 1), jnp.float32),    # running sum  l
            pltpu.VMEM((tq, H), jnp.float32),               # running context (heads concat in lanes)
        ],
    )

    cd_bytes = cd.itemsize
    out_bytes = jnp.dtype(out_dtype).itemsize
    flops = (2 * B * (Tq + 2 * Tk) * D * H            # Q/K/V projections
             + 4 * B * Tq * Tk * H                    # scores + PV (all heads)
             + 2 * B * Tq * H * H)                    # output projection
    transcendentals = B * num_heads * Tq * Tk
    bytes_accessed = ((B * (Tq + 2 * Tk) * D + 3 * D * H + H * H) * cd_bytes
                      + B * Tq * H * out_bytes)

    # VMEM working set: single-buffered weights + double-buffered activation tiles + scratch
    # + live per-head score tiles; generous 2x headroom, clamped to safe limits.
    working_set = ((3 * D * H + H * H) * cd_bytes
                   + 2 * (tq * D + 2 * tk * D) * cd_bytes
                   + 2 * tq * H * out_bytes
                   + tq * H * (cd_bytes + 4)
                   + 2 * num_heads * tq * 4
                   + 2 * tq * tk * 4)
    vmem_limit = int(min(max(2 * working_set, 16 * 2 ** 20), 64 * 2 ** 20))

    return pl.pallas_call(
        kernel,
        out_shape=jax.ShapeDtypeStruct((B, Tq, H), out_dtype),
        grid_spec=grid_spec,
        compiler_params=pltpu.CompilerParams(
            dimension_semantics=("parallel", "parallel", "arbitrary"),
            vmem_limit_bytes=vmem_limit,
        ),
        cost_estimate=pl.CostEstimate(flops=int(flops),
                                      transcendentals=int(transcendentals),
                                      bytes_accessed=int(bytes_accessed)),
    )(valid_lens, xq_, xk_, xv_, wq_, wk_, wv_, wo_)


def reference(xq, xk, xv, valid_lens, wq, wk, wv, wo, num_heads):
    """Pure-JAX replica of the PyTorch forward for validation."""
    B, Tq, _ = xq.shape
    H = wq.shape[1]
    d = H // num_heads

    def split_heads(X):
        X = X.reshape(B, -1, num_heads, d).transpose(0, 2, 1, 3)
        return X.reshape(B * num_heads, -1, d)

    Qh = split_heads(xq @ wq)
    Kh = split_heads(xk @ wk)
    Vh = split_heads(xv @ wv)

    scores = jnp.einsum('bqd,bkd->bqk', Qh, Kh) / math.sqrt(d)
    vl = jnp.repeat(valid_lens, num_heads)
    mask = jnp.arange(Kh.shape[1])[None, :] < vl[:, None]
    scores = jnp.where(mask[:, None, :], scores, MASK_VALUE)
    w = jax.nn.softmax(scores, axis=-1)
    out = jnp.einsum('bqk,bkd->bqd', w, Vh)
    out = out.reshape(B, num_heads, Tq, d).transpose(0, 2, 1, 3).reshape(B, Tq, H)
    return out @ wo


if __name__ == "__main__":
    B, Tq, Tk = 2, 16, 16
    num_hiddens, num_heads = 32, 4
    D_in = num_hiddens                     # LazyLinear infers the input dim

    key = jax.random.PRNGKey(0)
    kq, kk, kv, kwq, kwk, kwv, kwo = jax.random.split(key, 7)

    xq = jax.random.normal(kq, (B, Tq, D_in), dtype=jnp.float32)
    xk = jax.random.normal(kk, (B, Tk, D_in), dtype=jnp.float32)
    xv = jax.random.normal(kv, (B, Tk, D_in), dtype=jnp.float32)
    valid_lens = jnp.array([3, 11], dtype=jnp.int32)   # batch 0: a fully-masked kv tile

    w_scale = 1.0 / math.sqrt(num_hiddens)
    wq = jax.random.normal(kwq, (D_in, num_hiddens), jnp.float32) * w_scale
    wk = jax.random.normal(kwk, (D_in, num_hiddens), jnp.float32) * w_scale
    wv = jax.random.normal(kwv, (D_in, num_hiddens), jnp.float32) * w_scale
    wo = jax.random.normal(kwo, (num_hiddens, num_hiddens), jnp.float32) * w_scale

    ref = reference(xq, xk, xv, valid_lens, wq, wk, wv, wo, num_heads)

    # f32 operands + exact reciprocal + 8x8 sequence tiles: exercises the multi-tile
    # online-softmax path (grid (2, 2, 2)) and matches the PyTorch module numerics tightly.
    out_f32 = multi_head_attention(xq, xk, xv, valid_lens, wq, wk, wv, wo, num_heads,
                                   compute_dtype=jnp.float32, approx_reciprocal=False,
                                   q_tile=8, k_tile=8)
    out_f32 = jax.block_until_ready(out_f32)
    assert out_f32.shape == (B, Tq, num_hiddens)
    assert jnp.allclose(out_f32, ref, atol=5e-3, rtol=5e-3), "f32 kernel mismatch vs reference"

    # Default fast path: bf16 MXU operands (all TPU generations), approx softmax denominator,
    # single sequence tile.  Looser tolerance covers bf16 operand rounding.
    out_bf16 = multi_head_attention(xq, xk, xv, valid_lens, wq, wk, wv, wo, num_heads)
    out_bf16 = jax.block_until_ready(out_bf16)
    assert out_bf16.shape == (B, Tq, num_hiddens)
    assert jnp.allclose(out_bf16, ref, atol=1e-1, rtol=1e-1), "bf16 kernel mismatch vs reference"

    print("KERNEL_OK")
</pallas_src>

<mosaic_0001>
module attributes {stable_mosaic.version = 11 : i64} {
  func.func @mha_kernel(%arg0: i32, %arg1: i32, %arg2: i32, %arg3: memref<2xi32, #tpu.memory_space<smem>>, %arg4: memref<1x8x32xf32, #tpu.memory_space<vmem>>, %arg5: memref<1x8x32xf32, #tpu.memory_space<vmem>>, %arg6: memref<1x8x32xf32, #tpu.memory_space<vmem>>, %arg7: memref<32x32xf32, #tpu.memory_space<vmem>>, %arg8: memref<32x32xf32, #tpu.memory_space<vmem>>, %arg9: memref<32x32xf32, #tpu.memory_space<vmem>>, %arg10: memref<32x32xf32, #tpu.memory_space<vmem>>, %arg11: memref<1x8x32xf32, #tpu.memory_space<vmem>>, %arg12: memref<8x32xf32, #tpu.memory_space<vmem>>, %arg13: memref<4x8x1xf32, #tpu.memory_space<vmem>>, %arg14: memref<4x8x1xf32, #tpu.memory_space<vmem>>, %arg15: memref<8x32xf32, #tpu.memory_space<vmem>>) attributes {dimension_semantics = [#tpu.dimension_semantics<parallel>, #tpu.dimension_semantics<parallel>, #tpu.dimension_semantics<arbitrary>], iteration_bounds = array<i64: 2, 2, 2>, scalar_prefetch = 1 : i64, scratch_operands = 4 : i64, tpu.core_type = #tpu.core_type<tc>, window_params = [{transform_indices = @transform_0, window_bounds = array<i64: 1, 8, 32>}, {transform_indices = @transform_1, window_bounds = array<i64: 1, 8, 32>}, {transform_indices = @transform_2, window_bounds = array<i64: 1, 8, 32>}, {pipeline_mode = #tpu.pipeline_mode<synchronous>, transform_indices = @transform_3, window_bounds = array<i64: 32, 32>}, {pipeline_mode = #tpu.pipeline_mode<synchronous>, transform_indices = @transform_4, window_bounds = array<i64: 32, 32>}, {pipeline_mode = #tpu.pipeline_mode<synchronous>, transform_indices = @transform_5, window_bounds = array<i64: 32, 32>}, {pipeline_mode = #tpu.pipeline_mode<synchronous>, transform_indices = @transform_6, window_bounds = array<i64: 32, 32>}, {transform_indices = @transform_7, window_bounds = array<i64: 1, 8, 32>}]} {
    %0 = arith.index_cast %arg0 : i32 to index
    %1 = memref.load %arg3[%0] : memref<2xi32, #tpu.memory_space<smem>>
    %c0_i32 = arith.constant 0 : i32
    %2 = arith.cmpi eq, %arg2, %c0_i32 : i32
    %3 = arith.extui %2 : i1 to i32
    %c0_i32_0 = arith.constant 0 : i32
    %4 = arith.cmpi ne, %3, %c0_i32_0 : i32
    scf.if %4 {
      %c0_92 = arith.constant 0 : index
      %c0_93 = arith.constant 0 : index
      %c0_94 = arith.constant 0 : index
      %167 = vector.load %arg4[%c0_92, %c0_93, %c0_94] : memref<1x8x32xf32, #tpu.memory_space<vmem>>, vector<1x8x32xf32>
      %168 = vector.shape_cast %167 : vector<1x8x32xf32> to vector<8x32xf32>
      %c0_95 = arith.constant 0 : index
      %c0_96 = arith.constant 0 : index
      %169 = vector.load %arg7[%c0_95, %c0_96] : memref<32x32xf32, #tpu.memory_space<vmem>>, vector<32x32xf32>
      %cst_97 = arith.constant dense<0.000000e+00> : vector<8x32xf32>
      %170 = tpu.matmul %168, %169, %cst_97 {dimension_numbers = #tpu.dot_dimension_numbers<[1], [0], [0], [1], [0, 0, 1, 1], [], []>} : vector<8x32xf32>, vector<32x32xf32>, vector<8x32xf32> -> vector<8x32xf32>
      %c0_98 = arith.constant 0 : index
      %c0_99 = arith.constant 0 : index
      %171 = vector.load %arg12[%c0_98, %c0_99] : memref<8x32xf32, #tpu.memory_space<vmem>>, vector<8x32xf32>
      tpu.vector_store %arg12[%c0_98, %c0_99], %170 {strides = array<i32>} : memref<8x32xf32, #tpu.memory_space<vmem>>, vector<8x32xf32>,
      %cst_100 = arith.constant -1.000000e+30 : f32
      %172 = vector.broadcast %cst_100 : f32 to vector<4x8x1xf32>
      %c0_101 = arith.constant 0 : index
      %c0_102 = arith.constant 0 : index
      %c0_103 = arith.constant 0 : index
      %173 = vector.load %arg13[%c0_101, %c0_102, %c0_103] : memref<4x8x1xf32, #tpu.memory_space<vmem>>, vector<4x8x1xf32>
      tpu.vector_store %arg13[%c0_101, %c0_102, %c0_103], %172 {strides = array<i32>} : memref<4x8x1xf32, #tpu.memory_space<vmem>>, vector<4x8x1xf32>,
      %cst_104 = arith.constant 0.000000e+00 : f32
      %174 = vector.broadcast %cst_104 : f32 to vector<4x8x1xf32>
      %c0_105 = arith.constant 0 : index
      %c0_106 = arith.constant 0 : index
      %c0_107 = arith.constant 0 : index
      %175 = vector.load %arg14[%c0_105, %c0_106, %c0_107] : memref<4x8x1xf32, #tpu.memory_space<vmem>>, vector<4x8x1xf32>
      tpu.vector_store %arg14[%c0_105, %c0_106, %c0_107], %174 {strides = array<i32>} : memref<4x8x1xf32, #tpu.memory_space<vmem>>, vector<4x8x1xf32>,
      %cst_108 = arith.constant 0.000000e+00 : f32
      %176 = vector.broadcast %cst_108 : f32 to vector<8x32xf32>
      %c0_109 = arith.constant 0 : index
      %c0_110 = arith.constant 0 : index
      %177 = vector.load %arg15[%c0_109, %c0_110] : memref<8x32xf32, #tpu.memory_space<vmem>>, vector<8x32xf32>
      tpu.vector_store %arg15[%c0_109, %c0_110], %176 {strides = array<i32>} : memref<8x32xf32, #tpu.memory_space<vmem>>, vector<8x32xf32>,
    } else {
    }
    %c0 = arith.constant 0 : index
    %c0_1 = arith.constant 0 : index
    %c0_2 = arith.constant 0 : index
    %5 = vector.load %arg5[%c0, %c0_1, %c0_2] : memref<1x8x32xf32, #tpu.memory_space<vmem>>, vector<1x8x32xf32>
    %6 = vector.shape_cast %5 : vector<1x8x32xf32> to vector<8x32xf32>
    %c0_3 = arith.constant 0 : index
    %c0_4 = arith.constant 0 : index
    %7 = vector.load %arg8[%c0_3, %c0_4] : memref<32x32xf32, #tpu.memory_space<vmem>>, vector<32x32xf32>
    %cst = arith.constant dense<0.000000e+00> : vector<8x32xf32>
    %8 = tpu.matmul %6, %7, %cst {dimension_numbers = #tpu.dot_dimension_numbers<[1], [0], [0], [1], [0, 0, 1, 1], [], []>} : vector<8x32xf32>, vector<32x32xf32>, vector<8x32xf32> -> vector<8x32xf32>
    %c0_5 = arith.constant 0 : index
    %c0_6 = arith.constant 0 : index
    %c0_7 = arith.constant 0 : index
    %9 = vector.load %arg6[%c0_5, %c0_6, %c0_7] : memref<1x8x32xf32, #tpu.memory_space<vmem>>, vector<1x8x32xf32>
    %10 = vector.shape_cast %9 : vector<1x8x32xf32> to vector<8x32xf32>
    %c0_8 = arith.constant 0 : index
    %c0_9 = arith.constant 0 : index
    %11 = vector.load %arg9[%c0_8, %c0_9] : memref<32x32xf32, #tpu.memory_space<vmem>>, vector<32x32xf32>
    %cst_10 = arith.constant dense<0.000000e+00> : vector<8x32xf32>
    %12 = tpu.matmul %10, %11, %cst_10 {dimension_numbers = #tpu.dot_dimension_numbers<[1], [0], [0], [1], [0, 0, 1, 1], [], []>} : vector<8x32xf32>, vector<32x32xf32>, vector<8x32xf32> -> vector<8x32xf32>
    %c8_i32 = arith.constant 8 : i32
    %13 = arith.muli %arg2, %c8_i32 : i32
    %14 = tpu.iota {dimensions = array<i32: 1>} : vector<1x8xi32>
    %15 = vector.broadcast %13 : i32 to vector<1x8xi32>
    %16 = arith.addi %15, %14 : vector<1x8xi32>
    %17 = vector.broadcast %1 : i32 to vector<1x8xi32>
    %18 = arith.cmpi slt, %16, %17 : vector<1x8xi32>
    %c0_11 = arith.constant 0 : index
    %c0_12 = arith.constant 0 : index
    %19 = vector.load %arg12[%c0_11, %c0_12] : memref<8x32xf32, #tpu.memory_space<vmem>>, vector<8x32xf32>
    %20 = vector.extract_strided_slice %19 {offsets = [0, 0], sizes = [8, 8], strides = [1, 1]} : vector<8x32xf32> to vector<8x8xf32>
    %21 = vector.extract_strided_slice %8 {offsets = [0, 0], sizes = [8, 8], strides = [1, 1]} : vector<8x32xf32> to vector<8x8xf32>
    %cst_13 = arith.constant dense<0.000000e+00> : vector<8x8xf32>
    %22 = tpu.matmul %20, %21, %cst_13 {dimension_numbers = #tpu.dot_dimension_numbers<[1], [1], [0], [0], [0, 0, 1, 0], [], []>} : vector<8x8xf32>, vector<8x8xf32>, vector<8x8xf32> -> vector<8x8xf32>
    %cst_14 = arith.constant -1.000000e+06 : f32
    %23 = vector.shape_cast %18 : vector<1x8xi1> to vector<1x8xi1>
    %24 = vector.broadcast %23 : vector<1x8xi1> to vector<8x8xi1>
    %25 = vector.broadcast %cst_14 : f32 to vector<8x8xf32>
    %26 = arith.select %24, %22, %25 : vector<8x8xi1>, vector<8x8xf32>
    %c0_15 = arith.constant 0 : index
    %c0_16 = arith.constant 0 : index
    %c0_17 = arith.constant 0 : index
    %27 = vector.load %arg13[%c0_15, %c0_16, %c0_17] : memref<4x8x1xf32, #tpu.memory_space<vmem>>, vector<1x8x1xf32>
    %28 = vector.shape_cast %27 : vector<1x8x1xf32> to vector<8x1xf32>
    %cst_18 = arith.constant dense<0xFF800000> : vector<8xf32>
    %29 = vector.multi_reduction <maximumf>, %26, %cst_18 [1] : vector<8x8xf32> to vector<8xf32>
    %30 = vector.shape_cast %29 : vector<8xf32> to vector<8x1xf32>
    %31 = arith.maximumf %28, %30 : vector<8x1xf32>
    %32 = arith.subf %28, %31 : vector<8x1xf32>
    %33 = math.exp %32 : vector<8x1xf32>
    %34 = vector.broadcast %31 : vector<8x1xf32> to vector<8x8xf32>
    %35 = arith.subf %26, %34 : vector<8x8xf32>
    %36 = math.exp %35 : vector<8x8xf32>
    %c0_19 = arith.constant 0 : index
    %c0_20 = arith.constant 0 : index
    %c0_21 = arith.constant 0 : index
    %37 = vector.load %arg14[%c0_19, %c0_20, %c0_21] : memref<4x8x1xf32, #tpu.memory_space<vmem>>, vector<1x8x1xf32>
    %38 = vector.shape_cast %37 : vector<1x8x1xf32> to vector<8x1xf32>
    %39 = arith.mulf %33, %38 : vector<8x1xf32>
    %cst_22 = arith.constant dense<0.000000e+00> : vector<8xf32>
    %40 = vector.multi_reduction <add>, %36, %cst_22 [1] : vector<8x8xf32> to vector<8xf32>
    %41 = vector.shape_cast %40 : vector<8xf32> to vector<8x1xf32>
    %42 = arith.addf %39, %41 : vector<8x1xf32>
    %c0_23 = arith.constant 0 : index
    %c0_24 = arith.constant 0 : index
    %c0_25 = arith.constant 0 : index
    %43 = vector.load %arg14[%c0_23, %c0_24, %c0_25] : memref<4x8x1xf32, #tpu.memory_space<vmem>>, vector<1x8x1xf32>
    %44 = vector.shape_cast %43 : vector<1x8x1xf32> to vector<8x1xf32>
    %45 = vector.shape_cast %42 : vector<8x1xf32> to vector<1x8x1xf32>
    tpu.vector_store %arg14[%c0_23, %c0_24, %c0_25], %45 {strides = array<i32>} : memref<4x8x1xf32, #tpu.memory_space<vmem>>, vector<1x8x1xf32>,
    %c0_26 = arith.constant 0 : index
    %c0_27 = arith.constant 0 : index
    %c0_28 = arith.constant 0 : index
    %46 = vector.load %arg13[%c0_26, %c0_27, %c0_28] : memref<4x8x1xf32, #tpu.memory_space<vmem>>, vector<1x8x1xf32>
    %47 = vector.shape_cast %46 : vector<1x8x1xf32> to vector<8x1xf32>
    %48 = vector.shape_cast %31 : vector<8x1xf32> to vector<1x8x1xf32>
    tpu.vector_store %arg13[%c0_26, %c0_27, %c0_28], %48 {strides = array<i32>} : memref<4x8x1xf32, #tpu.memory_space<vmem>>, vector<1x8x1xf32>,
    %49 = vector.extract_strided_slice %12 {offsets = [0, 0], sizes = [8, 8], strides = [1, 1]} : vector<8x32xf32> to vector<8x8xf32>
    %cst_29 = arith.constant dense<0.000000e+00> : vector<8x8xf32>
    %50 = tpu.matmul %36, %49, %cst_29 {dimension_numbers = #tpu.dot_dimension_numbers<[1], [0], [0], [1], [0, 0, 1, 1], [], []>} : vector<8x8xf32>, vector<8x8xf32>, vector<8x8xf32> -> vector<8x8xf32>
    %c0_30 = arith.constant 0 : index
    %c0_31 = arith.constant 0 : index
    %51 = vector.load %arg15[%c0_30, %c0_31] : memref<8x32xf32, #tpu.memory_space<vmem>>, vector<8x8xf32>
    %52 = vector.broadcast %33 : vector<8x1xf32> to vector<8x8xf32>
    %53 = arith.mulf %52, %51 : vector<8x8xf32>
    %54 = arith.addf %53, %50 : vector<8x8xf32>
    %c0_32 = arith.constant 0 : index
    %c0_33 = arith.constant 0 : index
    %55 = vector.load %arg15[%c0_32, %c0_33] : memref<8x32xf32, #tpu.memory_space<vmem>>, vector<8x8xf32>
    tpu.vector_store %arg15[%c0_32, %c0_33], %54 {strides = array<i32>} : memref<8x32xf32, #tpu.memory_space<vmem>>, vector<8x8xf32>,
    %56 = vector.extract_strided_slice %19 {offsets = [0, 8], sizes = [8, 8], strides = [1, 1]} : vector<8x32xf32> to vector<8x8xf32>
    %57 = vector.extract_strided_slice %8 {offsets = [0, 8], sizes = [8, 8], strides = [1, 1]} : vector<8x32xf32> to vector<8x8xf32>
    %cst_34 = arith.constant dense<0.000000e+00> : vector<8x8xf32>
    %58 = tpu.matmul %56, %57, %cst_34 {dimension_numbers = #tpu.dot_dimension_numbers<[1], [1], [0], [0], [0, 0, 1, 0], [], []>} : vector<8x8xf32>, vector<8x8xf32>, vector<8x8xf32> -> vector<8x8xf32>
    %cst_35 = arith.constant -1.000000e+06 : f32
    %59 = vector.shape_cast %18 : vector<1x8xi1> to vector<1x8xi1>
    %60 = vector.broadcast %59 : vector<1x8xi1> to vector<8x8xi1>
    %61 = vector.broadcast %cst_35 : f32 to vector<8x8xf32>
    %62 = arith.select %60, %58, %61 : vector<8x8xi1>, vector<8x8xf32>
    %c1 = arith.constant 1 : index
    %c0_36 = arith.constant 0 : index
    %c0_37 = arith.constant 0 : index
    %63 = vector.load %arg13[%c1, %c0_36, %c0_37] : memref<4x8x1xf32, #tpu.memory_space<vmem>>, vector<1x8x1xf32>
    %64 = vector.shape_cast %63 : vector<1x8x1xf32> to vector<8x1xf32>
    %cst_38 = arith.constant dense<0xFF800000> : vector<8xf32>
    %65 = vector.multi_reduction <maximumf>, %62, %cst_38 [1] : vector<8x8xf32> to vector<8xf32>
    %66 = vector.shape_cast %65 : vector<8xf32> to vector<8x1xf32>
    %67 = arith.maximumf %64, %66 : vector<8x1xf32>
    %68 = arith.subf %64, %67 : vector<8x1xf32>
    %69 = math.exp %68 : vector<8x1xf32>
    %70 = vector.broadcast %67 : vector<8x1xf32> to vector<8x8xf32>
    %71 = arith.subf %62, %70 : vector<8x8xf32>
    %72 = math.exp %71 : vector<8x8xf32>
    %c1_39 = arith.constant 1 : index
    %c0_40 = arith.constant 0 : index
    %c0_41 = arith.constant 0 : index
    %73 = vector.load %arg14[%c1_39, %c0_40, %c0_41] : memref<4x8x1xf32, #tpu.memory_space<vmem>>, vector<1x8x1xf32>
    %74 = vector.shape_cast %73 : vector<1x8x1xf32> to vector<8x1xf32>
    %75 = arith.mulf %69, %74 : vector<8x1xf32>
    %cst_42 = arith.constant dense<0.000000e+00> : vector<8xf32>
    %76 = vector.multi_reduction <add>, %72, %cst_42 [1] : vector<8x8xf32> to vector<8xf32>
    %77 = vector.shape_cast %76 : vector<8xf32> to vector<8x1xf32>
    %78 = arith.addf %75, %77 : vector<8x1xf32>
    %c1_43 = arith.constant 1 : index
    %c0_44 = arith.constant 0 : index
    %c0_45 = arith.constant 0 : index
    %79 = vector.load %arg14[%c1_43, %c0_44, %c0_45] : memref<4x8x1xf32, #tpu.memory_space<vmem>>, vector<1x8x1xf32>
    %80 = vector.shape_cast %79 : vector<1x8x1xf32> to vector<8x1xf32>
    %81 = vector.shape_cast %78 : vector<8x1xf32> to vector<1x8x1xf32>
    tpu.vector_store %arg14[%c1_43, %c0_44, %c0_45], %81 {strides = array<i32>} : memref<4x8x1xf32, #tpu.memory_space<vmem>>, vector<1x8x1xf32>,
    %c1_46 = arith.constant 1 : index
    %c0_47 = arith.constant 0 : index
    %c0_48 = arith.constant 0 : index
    %82 = vector.load %arg13[%c1_46, %c0_47, %c0_48] : memref<4x8x1xf32, #tpu.memory_space<vmem>>, vector<1x8x1xf32>
    %83 = vector.shape_cast %82 : vector<1x8x1xf32> to vector<8x1xf32>
    %84 = vector.shape_cast %67 : vector<8x1xf32> to vector<1x8x1xf32>
    tpu.vector_store %arg13[%c1_46, %c0_47, %c0_48], %84 {strides = array<i32>} : memref<4x8x1xf32, #tpu.memory_space<vmem>>, vector<1x8x1xf32>,
    %85 = vector.extract_strided_slice %12 {offsets = [0, 8], sizes = [8, 8], strides = [1, 1]} : vector<8x32xf32> to vector<8x8xf32>
    %cst_49 = arith.constant dense<0.000000e+00> : vector<8x8xf32>
    %86 = tpu.matmul %72, %85, %cst_49 {dimension_numbers = #tpu.dot_dimension_numbers<[1], [0], [0], [1], [0, 0, 1, 1], [], []>} : vector<8x8xf32>, vector<8x8xf32>, vector<8x8xf32> -> vector<8x8xf32>
    %c0_50 = arith.constant 0 : index
    %c8 = arith.constant 8 : index
    %87 = vector.load %arg15[%c0_50, %c8] : memref<8x32xf32, #tpu.memory_space<vmem>>, vector<8x8xf32>
    %88 = vector.broadcast %69 : vector<8x1xf32> to vector<8x8xf32>
    %89 = arith.mulf %88, %87 : vector<8x8xf32>
    %90 = arith.addf %89, %86 : vector<8x8xf32>
    %c0_51 = arith.constant 0 : index
    %c8_52 = arith.constant 8 : index
    %91 = vector.load %arg15[%c0_51, %c8_52] : memref<8x32xf32, #tpu.memory_space<vmem>>, vector<8x8xf32>
    tpu.vector_store %arg15[%c0_51, %c8_52], %90 {strides = array<i32>} : memref<8x32xf32, #tpu.memory_space<vmem>>, vector<8x8xf32>,
    %92 = vector.extract_strided_slice %19 {offsets = [0, 16], sizes = [8, 8], strides = [1, 1]} : vector<8x32xf32> to vector<8x8xf32>
    %93 = vector.extract_strided_slice %8 {offsets = [0, 16], sizes = [8, 8], strides = [1, 1]} : vector<8x32xf32> to vector<8x8xf32>
    %cst_53 = arith.constant dense<0.000000e+00> : vector<8x8xf32>
    %94 = tpu.matmul %92, %93, %cst_53 {dimension_numbers = #tpu.dot_dimension_numbers<[1], [1], [0], [0], [0, 0, 1, 0], [], []>} : vector<8x8xf32>, vector<8x8xf32>, vector<8x8xf32> -> vector<8x8xf32>
    %cst_54 = arith.constant -1.000000e+06 : f32
    %95 = vector.shape_cast %18 : vector<1x8xi1> to vector<1x8xi1>
    %96 = vector.broadcast %95 : vector<1x8xi1> to vector<8x8xi1>
    %97 = vector.broadcast %cst_54 : f32 to vector<8x8xf32>
    %98 = arith.select %96, %94, %97 : vector<8x8xi1>, vector<8x8xf32>
    %c2 = arith.constant 2 : index
    %c0_55 = arith.constant 0 : index
    %c0_56 = arith.constant 0 : index
    %99 = vector.load %arg13[%c2, %c0_55, %c0_56] : memref<4x8x1xf32, #tpu.memory_space<vmem>>, vector<1x8x1xf32>
    %100 = vector.shape_cast %99 : vector<1x8x1xf32> to vector<8x1xf32>
    %cst_57 = arith.constant dense<0xFF800000> : vector<8xf32>
    %101 = vector.multi_reduction <maximumf>, %98, %cst_57 [1] : vector<8x8xf32> to vector<8xf32>
    %102 = vector.shape_cast %101 : vector<8xf32> to vector<8x1xf32>
    %103 = arith.maximumf %100, %102 : vector<8x1xf32>
    %104 = arith.subf %100, %103 : vector<8x1xf32>
    %105 = math.exp %104 : vector<8x1xf32>
    %106 = vector.broadcast %103 : vector<8x1xf32> to vector<8x8xf32>
    %107 = arith.subf %98, %106 : vector<8x8xf32>
    %108 = math.exp %107 : vector<8x8xf32>
    %c2_58 = arith.constant 2 : index
    %c0_59 = arith.constant 0 : index
    %c0_60 = arith.constant 0 : index
    %109 = vector.load %arg14[%c2_58, %c0_59, %c0_60] : memref<4x8x1xf32, #tpu.memory_space<vmem>>, vector<1x8x1xf32>
    %110 = vector.shape_cast %109 : vector<1x8x1xf32> to vector<8x1xf32>
    %111 = arith.mulf %105, %110 : vector<8x1xf32>
    %cst_61 = arith.constant dense<0.000000e+00> : vector<8xf32>
    %112 = vector.multi_reduction <add>, %108, %cst_61 [1] : vector<8x8xf32> to vector<8xf32>
    %113 = vector.shape_cast %112 : vector<8xf32> to vector<8x1xf32>
    %114 = arith.addf %111, %113 : vector<8x1xf32>
    %c2_62 = arith.constant 2 : index
    %c0_63 = arith.constant 0 : index
    %c0_64 = arith.constant 0 : index
    %115 = vector.load %arg14[%c2_62, %c0_63, %c0_64] : memref<4x8x1xf32, #tpu.memory_space<vmem>>, vector<1x8x1xf32>
    %116 = vector.shape_cast %115 : vector<1x8x1xf32> to vector<8x1xf32>
    %117 = vector.shape_cast %114 : vector<8x1xf32> to vector<1x8x1xf32>
    tpu.vector_store %arg14[%c2_62, %c0_63, %c0_64], %117 {strides = array<i32>} : memref<4x8x1xf32, #tpu.memory_space<vmem>>, vector<1x8x1xf32>,
    %c2_65 = arith.constant 2 : index
    %c0_66 = arith.constant 0 : index
    %c0_67 = arith.constant 0 : index
    %118 = vector.load %arg13[%c2_65, %c0_66, %c0_67] : memref<4x8x1xf32, #tpu.memory_space<vmem>>, vector<1x8x1xf32>
    %119 = vector.shape_cast %118 : vector<1x8x1xf32> to vector<8x1xf32>
    %120 = vector.shape_cast %103 : vector<8x1xf32> to vector<1x8x1xf32>
    tpu.vector_store %arg13[%c2_65, %c0_66, %c0_67], %120 {strides = array<i32>} : memref<4x8x1xf32, #tpu.memory_space<vmem>>, vector<1x8x1xf32>,
    %121 = vector.extract_strided_slice %12 {offsets = [0, 16], sizes = [8, 8], strides = [1, 1]} : vector<8x32xf32> to vector<8x8xf32>
    %cst_68 = arith.constant dense<0.000000e+00> : vector<8x8xf32>
    %122 = tpu.matmul %108, %121, %cst_68 {dimension_numbers = #tpu.dot_dimension_numbers<[1], [0], [0], [1], [0, 0, 1, 1], [], []>} : vector<8x8xf32>, vector<8x8xf32>, vector<8x8xf32> -> vector<8x8xf32>
    %c0_69 = arith.constant 0 : index
    %c16 = arith.constant 16 : index
    %123 = vector.load %arg15[%c0_69, %c16] : memref<8x32xf32, #tpu.memory_space<vmem>>, vector<8x8xf32>
    %124 = vector.broadcast %105 : vector<8x1xf32> to vector<8x8xf32>
    %125 = arith.mulf %124, %123 : vector<8x8xf32>
    %126 = arith.addf %125, %122 : vector<8x8xf32>
    %c0_70 = arith.constant 0 : index
    %c16_71 = arith.constant 16 : index
    %127 = vector.load %arg15[%c0_70, %c16_71] : memref<8x32xf32, #tpu.memory_space<vmem>>, vector<8x8xf32>
    tpu.vector_store %arg15[%c0_70, %c16_71], %126 {strides = array<i32>} : memref<8x32xf32, #tpu.memory_space<vmem>>, vector<8x8xf32>,
    %128 = vector.extract_strided_slice %19 {offsets = [0, 24], sizes = [8, 8], strides = [1, 1]} : vector<8x32xf32> to vector<8x8xf32>
    %129 = vector.extract_strided_slice %8 {offsets = [0, 24], sizes = [8, 8], strides = [1, 1]} : vector<8x32xf32> to vector<8x8xf32>
    %cst_72 = arith.constant dense<0.000000e+00> : vector<8x8xf32>
    %130 = tpu.matmul %128, %129, %cst_72 {dimension_numbers = #tpu.dot_dimension_numbers<[1], [1], [0], [0], [0, 0, 1, 0], [], []>} : vector<8x8xf32>, vector<8x8xf32>, vector<8x8xf32> -> vector<8x8xf32>
    %cst_73 = arith.constant -1.000000e+06 : f32
    %131 = vector.shape_cast %18 : vector<1x8xi1> to vector<1x8xi1>
    %132 = vector.broadcast %131 : vector<1x8xi1> to vector<8x8xi1>
    %133 = vector.broadcast %cst_73 : f32 to vector<8x8xf32>
    %134 = arith.select %132, %130, %133 : vector<8x8xi1>, vector<8x8xf32>
    %c3 = arith.constant 3 : index
    %c0_74 = arith.constant 0 : index
    %c0_75 = arith.constant 0 : index
    %135 = vector.load %arg13[%c3, %c0_74, %c0_75] : memref<4x8x1xf32, #tpu.memory_space<vmem>>, vector<1x8x1xf32>
    %136 = vector.shape_cast %135 : vector<1x8x1xf32> to vector<8x1xf32>
    %cst_76 = arith.constant dense<0xFF800000> : vector<8xf32>
    %137 = vector.multi_reduction <maximumf>, %134, %cst_76 [1] : vector<8x8xf32> to vector<8xf32>
    %138 = vector.shape_cast %137 : vector<8xf32> to vector<8x1xf32>
    %139 = arith.maximumf %136, %138 : vector<8x1xf32>
    %140 = arith.subf %136, %139 : vector<8x1xf32>
    %141 = math.exp %140 : vector<8x1xf32>
    %142 = vector.broadcast %139 : vector<8x1xf32> to vector<8x8xf32>
    %143 = arith.subf %134, %142 : vector<8x8xf32>
    %144 = math.exp %143 : vector<8x8xf32>
    %c3_77 = arith.constant 3 : index
    %c0_78 = arith.constant 0 : index
    %c0_79 = arith.constant 0 : index
    %145 = vector.load %arg14[%c3_77, %c0_78, %c0_79] : memref<4x8x1xf32, #tpu.memory_space<vmem>>, vector<1x8x1xf32>
    %146 = vector.shape_cast %145 : vector<1x8x1xf32> to vector<8x1xf32>
    %147 = arith.mulf %141, %146 : vector<8x1xf32>
    %cst_80 = arith.constant dense<0.000000e+00> : vector<8xf32>
    %148 = vector.multi_reduction <add>, %144, %cst_80 [1] : vector<8x8xf32> to vector<8xf32>
    %149 = vector.shape_cast %148 : vector<8xf32> to vector<8x1xf32>
    %150 = arith.addf %147, %149 : vector<8x1xf32>
    %c3_81 = arith.constant 3 : index
    %c0_82 = arith.constant 0 : index
    %c0_83 = arith.constant 0 : index
    %151 = vector.load %arg14[%c3_81, %c0_82, %c0_83] : memref<4x8x1xf32, #tpu.memory_space<vmem>>, vector<1x8x1xf32>
    %152 = vector.shape_cast %151 : vector<1x8x1xf32> to vector<8x1xf32>
    %153 = vector.shape_cast %150 : vector<8x1xf32> to vector<1x8x1xf32>
    tpu.vector_store %arg14[%c3_81, %c0_82, %c0_83], %153 {strides = array<i32>} : memref<4x8x1xf32, #tpu.memory_space<vmem>>, vector<1x8x1xf32>,
    %c3_84 = arith.constant 3 : index
    %c0_85 = arith.constant 0 : index
    %c0_86 = arith.constant 0 : index
    %154 = vector.load %arg13[%c3_84, %c0_85, %c0_86] : memref<4x8x1xf32, #tpu.memory_space<vmem>>, vector<1x8x1xf32>
    %155 = vector.shape_cast %154 : vector<1x8x1xf32> to vector<8x1xf32>
    %156 = vector.shape_cast %139 : vector<8x1xf32> to vector<1x8x1xf32>
    tpu.vector_store %arg13[%c3_84, %c0_85, %c0_86], %156 {strides = array<i32>} : memref<4x8x1xf32, #tpu.memory_space<vmem>>, vector<1x8x1xf32>,
    %157 = vector.extract_strided_slice %12 {offsets = [0, 24], sizes = [8, 8], strides = [1, 1]} : vector<8x32xf32> to vector<8x8xf32>
    %cst_87 = arith.constant dense<0.000000e+00> : vector<8x8xf32>
    %158 = tpu.matmul %144, %157, %cst_87 {dimension_numbers = #tpu.dot_dimension_numbers<[1], [0], [0], [1], [0, 0, 1, 1], [], []>} : vector<8x8xf32>, vector<8x8xf32>, vector<8x8xf32> -> vector<8x8xf32>
    %c0_88 = arith.constant 0 : index
    %c24 = arith.constant 24 : index
    %159 = vector.load %arg15[%c0_88, %c24] : memref<8x32xf32, #tpu.memory_space<vmem>>, vector<8x8xf32>
    %160 = vector.broadcast %141 : vector<8x1xf32> to vector<8x8xf32>
    %161 = arith.mulf %160, %159 : vector<8x8xf32>
    %162 = arith.addf %161, %158 : vector<8x8xf32>
    %c0_89 = arith.constant 0 : index
    %c24_90 = arith.constant 24 : index
    %163 = vector.load %arg15[%c0_89, %c24_90] : memref<8x32xf32, #tpu.memory_space<vmem>>, vector<8x8xf32>
    tpu.vector_store %arg15[%c0_89, %c24_90], %162 {strides = array<i32>} : memref<8x32xf32, #tpu.memory_space<vmem>>, vector<8x8xf32>,
    %c1_i32 = arith.constant 1 : i32
    %164 = arith.cmpi eq, %arg2, %c1_i32 : i32
    %165 = arith.extui %164 : i1 to i32
    %c0_i32_91 = arith.constant 0 : i32
    %166 = arith.cmpi ne, %165, %c0_i32_91 : i32
    scf.if %166 {
      %c0_92 = arith.constant 0 : index
      %c0_93 = arith.constant 0 : index
      %c0_94 = arith.constant 0 : index
      %167 = vector.load %arg14[%c0_92, %c0_93, %c0_94] : memref<4x8x1xf32, #tpu.memory_space<vmem>>, vector<1x8x1xf32>
      %168 = vector.shape_cast %167 : vector<1x8x1xf32> to vector<8x1xf32>
      %cst_95 = arith.constant 1.000000e+00 : f32
      %169 = vector.broadcast %cst_95 : f32 to vector<8x1xf32>
      %170 = arith.divf %169, %168 : vector<8x1xf32>
      %c0_96 = arith.constant 0 : index
      %c0_97 = arith.constant 0 : index
      %171 = vector.load %arg15[%c0_96, %c0_97] : memref<8x32xf32, #tpu.memory_space<vmem>>, vector<8x8xf32>
      %172 = vector.broadcast %170 : vector<8x1xf32> to vector<8x8xf32>
      %173 = arith.mulf %171, %172 : vector<8x8xf32>
      %c0_98 = arith.constant 0 : index
      %c0_99 = arith.constant 0 : index
      %174 = vector.load %arg15[%c0_98, %c0_99] : memref<8x32xf32, #tpu.memory_space<vmem>>, vector<8x8xf32>
      tpu.vector_store %arg15[%c0_98, %c0_99], %173 {strides = array<i32>} : memref<8x32xf32, #tpu.memory_space<vmem>>, vector<8x8xf32>,
      %c1_100 = arith.constant 1 : index
      %c0_101 = arith.constant 0 : index
      %c0_102 = arith.constant 0 : index
      %175 = vector.load %arg14[%c1_100, %c0_101, %c0_102] : memref<4x8x1xf32, #tpu.memory_space<vmem>>, vector<1x8x1xf32>
      %176 = vector.shape_cast %175 : vector<1x8x1xf32> to vector<8x1xf32>
      %cst_103 = arith.constant 1.000000e+00 : f32
      %177 = vector.broadcast %cst_103 : f32 to vector<8x1xf32>
      %178 = arith.divf %177, %176 : vector<8x1xf32>
      %c0_104 = arith.constant 0 : index
      %c8_105 = arith.constant 8 : index
      %179 = vector.load %arg15[%c0_104, %c8_105] : memref<8x32xf32, #tpu.memory_space<vmem>>, vector<8x8xf32>
      %180 = vector.broadcast %178 : vector<8x1xf32> to vector<8x8xf32>
      %181 = arith.mulf %179, %180 : vector<8x8xf32>
      %c0_106 = arith.constant 0 : index
      %c8_107 = arith.constant 8 : index
      %182 = vector.load %arg15[%c0_106, %c8_107] : memref<8x32xf32, #tpu.memory_space<vmem>>, vector<8x8xf32>
      tpu.vector_store %arg15[%c0_106, %c8_107], %181 {strides = array<i32>} : memref<8x32xf32, #tpu.memory_space<vmem>>, vector<8x8xf32>,
      %c2_108 = arith.constant 2 : index
      %c0_109 = arith.constant 0 : index
      %c0_110 = arith.constant 0 : index
      %183 = vector.load %arg14[%c2_108, %c0_109, %c0_110] : memref<4x8x1xf32, #tpu.memory_space<vmem>>, vector<1x8x1xf32>
      %184 = vector.shape_cast %183 : vector<1x8x1xf32> to vector<8x1xf32>
      %cst_111 = arith.constant 1.000000e+00 : f32
      %185 = vector.broadcast %cst_111 : f32 to vector<8x1xf32>
      %186 = arith.divf %185, %184 : vector<8x1xf32>
      %c0_112 = arith.constant 0 : index
      %c16_113 = arith.constant 16 : index
      %187 = vector.load %arg15[%c0_112, %c16_113] : memref<8x32xf32, #tpu.memory_space<vmem>>, vector<8x8xf32>
      %188 = vector.broadcast %186 : vector<8x1xf32> to vector<8x8xf32>
      %189 = arith.mulf %187, %188 : vector<8x8xf32>
      %c0_114 = arith.constant 0 : index
      %c16_115 = arith.constant 16 : index
      %190 = vector.load %arg15[%c0_114, %c16_115] : memref<8x32xf32, #tpu.memory_space<vmem>>, vector<8x8xf32>
      tpu.vector_store %arg15[%c0_114, %c16_115], %189 {strides = array<i32>} : memref<8x32xf32, #tpu.memory_space<vmem>>, vector<8x8xf32>,
      %c3_116 = arith.constant 3 : index
      %c0_117 = arith.constant 0 : index
      %c0_118 = arith.constant 0 : index
      %191 = vector.load %arg14[%c3_116, %c0_117, %c0_118] : memref<4x8x1xf32, #tpu.memory_space<vmem>>, vector<1x8x1xf32>
      %192 = vector.shape_cast %191 : vector<1x8x1xf32> to vector<8x1xf32>
      %cst_119 = arith.constant 1.000000e+00 : f32
      %193 = vector.broadcast %cst_119 : f32 to vector<8x1xf32>
      %194 = arith.divf %193, %192 : vector<8x1xf32>
      %c0_120 = arith.constant 0 : index
      %c24_121 = arith.constant 24 : index
      %195 = vector.load %arg15[%c0_120, %c24_121] : memref<8x32xf32, #tpu.memory_space<vmem>>, vector<8x8xf32>
      %196 = vector.broadcast %194 : vector<8x1xf32> to vector<8x8xf32>
      %197 = arith.mulf %195, %196 : vector<8x8xf32>
      %c0_122 = arith.constant 0 : index
      %c24_123 = arith.constant 24 : index
      %198 = vector.load %arg15[%c0_122, %c24_123] : memref<8x32xf32, #tpu.memory_space<vmem>>, vector<8x8xf32>
      tpu.vector_store %arg15[%c0_122, %c24_123], %197 {strides = array<i32>} : memref<8x32xf32, #tpu.memory_space<vmem>>, vector<8x8xf32>,
      %c0_124 = arith.constant 0 : index
      %c0_125 = arith.constant 0 : index
      %199 = vector.load %arg15[%c0_124, %c0_125] : memref<8x32xf32, #tpu.memory_space<vmem>>, vector<8x32xf32>
      %c0_126 = arith.constant 0 : index
      %c0_127 = arith.constant 0 : index
      %200 = vector.load %arg10[%c0_126, %c0_127] : memref<32x32xf32, #tpu.memory_space<vmem>>, vector<32x32xf32>
      %cst_128 = arith.constant dense<0.000000e+00> : vector<8x32xf32>
      %201 = tpu.matmul %199, %200, %cst_128 {dimension_numbers = #tpu.dot_dimension_numbers<[1], [0], [0], [1], [0, 0, 1, 1], [], []>} : vector<8x32xf32>, vector<32x32xf32>, vector<8x32xf32> -> vector<8x32xf32>
      %c0_129 = arith.constant 0 : index
      %c0_130 = arith.constant 0 : index
      %c0_131 = arith.constant 0 : index
      %202 = vector.load %arg11[%c0_129, %c0_130, %c0_131] : memref<1x8x32xf32, #tpu.memory_space<vmem>>, vector<1x8x32xf32>
      %203 = vector.shape_cast %202 : vector<1x8x32xf32> to vector<8x32xf32>
      %204 = vector.shape_cast %201 : vector<8x32xf32> to vector<1x8x32xf32>
      tpu.vector_store %arg11[%c0_129, %c0_130, %c0_131], %204 {strides = array<i32>} : memref<1x8x32xf32, #tpu.memory_space<vmem>>, vector<1x8x32xf32>,
    } else {
    }
    return
  }
  func.func @transform_0(%arg0: i32, %arg1: i32, %arg2: i32, %arg3: memref<2xi32, #tpu.memory_space<smem>>) -> (i32, i32, i32) {
    %c0_i32 = arith.constant 0 : i32
    %c0_i32_0 = arith.constant 0 : i32
    return %arg0, %arg1, %c0_i32 : i32, i32, i32
  }
  func.func @transform_1(%arg0: i32, %arg1: i32, %arg2: i32, %arg3: memref<2xi32, #tpu.memory_space<smem>>) -> (i32, i32, i32) {
    %c0_i32 = arith.constant 0 : i32
    %c0_i32_0 = arith.constant 0 : i32
    return %arg0, %arg2, %c0_i32 : i32, i32, i32
  }
  func.func @transform_2(%arg0: i32, %arg1: i32, %arg2: i32, %arg3: memref<2xi32, #tpu.memory_space<smem>>) -> (i32, i32, i32) {
    %c0_i32 = arith.constant 0 : i32
    %c0_i32_0 = arith.constant 0 : i32
    return %arg0, %arg2, %c0_i32 : i32, i32, i32
  }
  func.func @transform_3(%arg0: i32, %arg1: i32, %arg2: i32, %arg3: memref<2xi32, #tpu.memory_space<smem>>) -> (i32, i32) {
    %c0_i32 = arith.constant 0 : i32
    %c0_i32_0 = arith.constant 0 : i32
    %c0_i32_1 = arith.constant 0 : i32
    return %c0_i32, %c0_i32_0 : i32, i32
  }
  func.func @transform_4(%arg0: i32, %arg1: i32, %arg2: i32, %arg3: memref<2xi32, #tpu.memory_space<smem>>) -> (i32, i32) {
    %c0_i32 = arith.constant 0 : i32
    %c0_i32_0 = arith.constant 0 : i32
    %c0_i32_1 = arith.constant 0 : i32
    return %c0_i32, %c0_i32_0 : i32, i32
  }
  func.func @transform_5(%arg0: i32, %arg1: i32, %arg2: i32, %arg3: memref<2xi32, #tpu.memory_space<smem>>) -> (i32, i32) {
    %c0_i32 = arith.constant 0 : i32
    %c0_i32_0 = arith.constant 0 : i32
    %c0_i32_1 = arith.constant 0 : i32
    return %c0_i32, %c0_i32_0 : i32, i32
  }
  func.func @transform_6(%arg0: i32, %arg1: i32, %arg2: i32, %arg3: memref<2xi32, #tpu.memory_space<smem>>) -> (i32, i32) {
    %c0_i32 = arith.constant 0 : i32
    %c0_i32_0 = arith.constant 0 : i32
    %c0_i32_1 = arith.constant 0 : i32
    return %c0_i32, %c0_i32_0 : i32, i32
  }
  func.func @transform_7(%arg0: i32, %arg1: i32, %arg2: i32, %arg3: memref<2xi32, #tpu.memory_space<smem>>) -> (i32, i32, i32) {
    %c0_i32 = arith.constant 0 : i32
    %c0_i32_0 = arith.constant 0 : i32
    return %arg0, %arg1, %c0_i32 : i32, i32, i32
  }
}

</mosaic_0001>

<llo_original>
// kernel: tpu_custom_call.1
$region0: #{tpu_custom_call.1}
  #allocation0 [shape = 'u32[]', space=smem, size = 0x4, offset = 0x4, fixed_abs, tag = 'smem constant byte address 0x4 - core index']
  #allocation1 [shape = 'u32[72,128]{1,0:T(1,128)}', space=vmem, size = 0x9000, scoped, tag = 'internal scratch']
  #allocation2 [shape = 'f32[8,32]{1,0:T(8,128)}', space=vmem, size = 0x1000, scoped, tag = 'scratch operand']
  #allocation3 [shape = 'f32[4,8,1]{2,1,0:T(8,128)}', space=vmem, size = 0x4000, scoped, tag = 'scratch operand']
  #allocation4 [shape = 'f32[4,8,1]{2,1,0:T(8,128)}', space=vmem, size = 0x4000, scoped, tag = 'scratch operand']
  #allocation5 [shape = 'f32[8,32]{1,0:T(8,128)}', space=vmem, size = 0x1000, scoped, tag = 'scratch operand']
  #allocation6 [shape = 's32[1]{0}', space=sflag, size = 0x4, scoped, tag = 'scoped memory for tpu_custom_call.1']
  #allocation7 [shape = 'u8[512]{0}', space=smem, size = 0x200, scoped, tag = 'prefetched SMEM operand 0']
  %s0 = inlined_call_operand.hbm [shape: s32[2], index: 0, kind: input, shape index: {}]
  %s1 = inlined_call_operand.hbm [shape: f32[2,16,32], index: 1, kind: input, shape index: {}]
  %s2 = inlined_call_operand.hbm [shape: f32[2,16,32], index: 2, kind: input, shape index: {}]
  %s3 = inlined_call_operand.hbm [shape: f32[2,16,32], index: 3, kind: input, shape index: {}]
  %s4 = inlined_call_operand.hbm [shape: f32[32,32], index: 4, kind: input, shape index: {}]
  %s5 = inlined_call_operand.hbm [shape: f32[32,32], index: 5, kind: input, shape index: {}]
  %s6 = inlined_call_operand.hbm [shape: f32[32,32], index: 6, kind: input, shape index: {}]
  %s7 = inlined_call_operand.hbm [shape: f32[32,32], index: 7, kind: input, shape index: {}]
  %s8 = inlined_call_operand.hbm [shape: f32[2,16,32], index: 8, kind: output, shape index: {}]
  %s9 = sld [smem:[#allocation0]]
  $region97: #{tpu_custom_call.1} parent=0
    _
  %s11 = ssub.s32 1, %s9
  %s12 = scalar_select 0, %s11, %s9
  %s14 = sshll.u32 %s0, 4
  %s15 = int_to_ptr.hbm [resolvable:$true] %s14
  %17 = dma.hbm_to_smem %s15, 16, [#allocation7], [#allocation6]
  %19 = dma.done [#allocation6], 16
  %20 = sfence
  $region1: #{tpu_custom_call.1} parent=0
    #allocation8 [shape = 'u8[8192]{0}', space=vmem, size = 0x2000, scoped, tag = 'input window, operand 1']
    #allocation9 [shape = 's32[2]{0}', space=sflag, size = 0x8, scoped, tag = 'scoped memory for tpu_custom_call.1']
    #allocation10 [shape = 's32[2]{0}', space=sflag, size = 0x8, scoped, tag = 'scoped memory for tpu_custom_call.1']
    #allocation11 [shape = 'u8[8192]{0}', space=vmem, size = 0x2000, scoped, tag = 'input window, operand 2']
    #allocation12 [shape = 's32[2]{0}', space=sflag, size = 0x8, scoped, tag = 'scoped memory for tpu_custom_call.1']
    #allocation13 [shape = 'u8[8192]{0}', space=vmem, size = 0x2000, scoped, tag = 'input window, operand 3']
    #allocation14 [shape = 'u8[16384]{0}', space=vmem, size = 0x4000, scoped, tag = 'input window, operand 4, single buffered']
    #allocation15 [shape = 's32[1]{0}', space=sflag, size = 0x4, scoped, tag = 'scoped memory for tpu_custom_call.1']
    #allocation16 [shape = 'u8[16384]{0}', space=vmem, size = 0x4000, scoped, tag = 'input window, operand 5, single buffered']
    #allocation17 [shape = 'u8[16384]{0}', space=vmem, size = 0x4000, scoped, tag = 'input window, operand 6, single buffered']
    #allocation18 [shape = 's32[1]{0}', space=sflag, size = 0x4, scoped, tag = 'scoped memory for tpu_custom_call.1']
    #allocation19 [shape = 'u8[16384]{0}', space=vmem, size = 0x4000, scoped, tag = 'input window, operand 7, single buffered']
    #allocation20 [shape = 'u8[8192]{0}', space=vmem, size = 0x2000, scoped, tag = 'output window, operand 0']
    %21 = vsyncpa [#allocation9], 0
    %s22 = scalar_lea.sflag [#allocation9], 1
    %23 = vsyncpa %s22, 0
    %24 = vsyncpa [#allocation12], 0
    %s25 = scalar_lea.sflag [#allocation12], 1
    %26 = vsyncpa %s25, 0
    %27 = vsyncpa [#allocation15], 0
    %28 = vsyncpa [#allocation18], 0
    %29 = vsyncpa [#allocation10], 0
    %s30 = scalar_lea.sflag [#allocation10], 1
    %31 = vsyncpa %s30, 0
    loop: start=0, step=1, limit=10
    $region2: #{tpu_custom_call.1} parent=1 // loop_pre_header
      _
    $region3: #{tpu_custom_call.1} parent=1 // loop_header
      %s33 = sphi 0, %s37
      %p34 = scmp.ge.s32.totalorder %s33, 10
      %s40 = sphi 0, %s59
      %s41 = sphi 0, %s55
      %s42 = sphi 0, %s51
      %s43 = sphi 0, %s40
      %s44 = sphi 0, %s41
      %s45 = sphi 0, %s42
      %s46 = sphi 0, %s43
      %s47 = sphi 0, %s44
      %s48 = sphi 0, %s45
      %s64 = sphi 0, %s66
      %s67 = sphi 0, %s64
      %s68 = sphi 0, %s67
      %s84 = sphi 0, %s68
      %s92 = sphi 0, %s94
      %s95 = sphi 0, %s92
      %s96 = sphi 0, %s95
      %s112 = sphi 0, %s96
      %s120 = sphi 0, %s122
      %s123 = sphi 0, %s120
      %s124 = sphi 0, %s123
      %s140 = sphi 0, %s124
      %s144 = sphi 0, %s144
      %s146 = sphi 0, %s144
      %s147 = sphi 0, %s146
      %s161 = sphi 0, %s147
      %s165 = sphi 0, %s165
      %s167 = sphi 0, %s165
      %s168 = sphi 0, %s167
      %s182 = sphi 0, %s168
      %s186 = sphi 0, %s186
      %s188 = sphi 0, %s186
      %s189 = sphi 0, %s188
      %s203 = sphi 0, %s189
      %s207 = sphi 0, %s207
      %s209 = sphi 0, %s207
      %s210 = sphi 0, %s209
      %s224 = sphi 0, %s210
      %s232 = sphi 0, %s234
      %s235 = sphi 0, %s232
      %s236 = sphi 0, %s235
      %s252 = sphi 0, %s236
    $region4: #{tpu_custom_call.1} parent=1 // loop_header_branch
      %36 = sbr.rel (%p34) target = $region8
    $region5: #{tpu_custom_call.1} parent=1 // loop_body
      %s38 = ssub.s32 %s33, 1
      %s39 = ssub.s32 %s33, 2
      %s49 = sadd.s32 1, %s42
      %p50 = scmp.ge.s32.totalorder %s49, 2
      %s51 = scalar_select %p50, 0, %s49
      %s52 = sadd.s32 1, %s41
      %s53 = scalar_select %p50, %s52, %s41
      %p54 = scmp.ge.s32.totalorder %s53, 2
      %s55 = scalar_select %p54, 0, %s53
      %s56 = sadd.s32 1, %s40
      %s57 = scalar_select %p54, %s56, %s40
      %p58 = scmp.ge.s32.totalorder %s57, 2
      %s59 = scalar_select %p58, 0, %s57
      %s60 = ssub.s32 %s40, %s59
      %s61 = ssub.s32 %s41, %s55
      %s62 = sor.u32 %s60, %s61
      %p63 = scmp.eq.s32.totalorder %s62, 0
      %s65 = sadd.s32 %s64, 1
      %s66 = scalar_select %p63, %s64, %s65
      %p69 = pneg %p63
      %p70 = scmp.eq.s32.totalorder %s33, 7
      %p71 = por %p69, %p70
      %p72 = scmp.ne.s32.totalorder %s64, %s67
      %p73 = scmp.eq.s32.totalorder %s33, 0
      %p74 = por %p72, %p73
      %p75 = scmp.ne.s32.totalorder %s64, %s67
      %p76 = scmp.eq.s32.totalorder %s38, 7
      %p77 = por %p75, %p76
      %p78 = scmp.ne.s32.totalorder %s67, %s68
      %p79 = scmp.eq.s32.totalorder %s38, 0
      %p80 = por %p78, %p79
      %p81 = scmp.ne.s32.totalorder %s67, %s68
      %p82 = scmp.eq.s32.totalorder %s39, 7
      %p83 = por %p81, %p82
      %p85 = scmp.ne.s32.totalorder %s68, %s84
      %p86 = scmp.eq.s32.totalorder %s39, 0
      %p87 = por %p85, %p86
      %s88 = ssub.s32 %s40, %s59
      %s89 = ssub.s32 %s42, %s51
      %s90 = sor.u32 %s88, %s89
      %p91 = scmp.eq.s32.totalorder %s90, 0
      %s93 = sadd.s32 %s92, 1
      %s94 = scalar_select %p91, %s92, %s93
      %p97 = pneg %p91
      %p98 = scmp.eq.s32.totalorder %s33, 7
      %p99 = por %p97, %p98
      %p100 = scmp.ne.s32.totalorder %s92, %s95
      %p101 = scmp.eq.s32.totalorder %s33, 0
      %p102 = por %p100, %p101
      %p103 = scmp.ne.s32.totalorder %s92, %s95
      %p104 = scmp.eq.s32.totalorder %s38, 7
      %p105 = por %p103, %p104
      %p106 = scmp.ne.s32.totalorder %s95, %s96
      %p107 = scmp.eq.s32.totalorder %s38, 0
      %p108 = por %p106, %p107
      %p109 = scmp.ne.s32.totalorder %s95, %s96
      %p110 = scmp.eq.s32.totalorder %s39, 7
      %p111 = por %p109, %p110
      %p113 = scmp.ne.s32.totalorder %s96, %s112
      %p114 = scmp.eq.s32.totalorder %s39, 0
      %p115 = por %p113, %p114
      %s116 = ssub.s32 %s40, %s59
      %s117 = ssub.s32 %s42, %s51
      %s118 = sor.u32 %s116, %s117
      %p119 = scmp.eq.s32.totalorder %s118, 0
      %s121 = sadd.s32 %s120, 1
      %s122 = scalar_select %p119, %s120, %s121
      %p125 = pneg %p119
      %p126 = scmp.eq.s32.totalorder %s33, 7
      %p127 = por %p125, %p126
      %p128 = scmp.ne.s32.totalorder %s120, %s123
      %p129 = scmp.eq.s32.totalorder %s33, 0
      %p130 = por %p128, %p129
      %p131 = scmp.ne.s32.totalorder %s120, %s123
      %p132 = scmp.eq.s32.totalorder %s38, 7
      %p133 = por %p131, %p132
      %p134 = scmp.ne.s32.totalorder %s123, %s124
      %p135 = scmp.eq.s32.totalorder %s38, 0
      %p136 = por %p134, %p135
      %p137 = scmp.ne.s32.totalorder %s123, %s124
      %p138 = scmp.eq.s32.totalorder %s39, 7
      %p139 = por %p137, %p138
      %p141 = scmp.ne.s32.totalorder %s124, %s140
      %p142 = scmp.eq.s32.totalorder %s39, 0
      %p143 = por %p141, %p142
      %s145 = sadd.s32 %s144, 1
      %p148 = scmp.eq.s32.totalorder %s33, 7
      %p149 = scmp.ne.s32.totalorder %s144, %s146
      %p150 = scmp.eq.s32.totalorder %s33, 0
      %p151 = por %p149, %p150
      %p152 = scmp.ne.s32.totalorder %s144, %s146
      %p153 = scmp.eq.s32.totalorder %s38, 7
      %p154 = por %p152, %p153
      %p155 = scmp.ne.s32.totalorder %s146, %s147
      %p156 = scmp.eq.s32.totalorder %s38, 0
      %p157 = por %p155, %p156
      %p158 = scmp.ne.s32.totalorder %s146, %s147
      %p159 = scmp.eq.s32.totalorder %s39, 7
      %p160 = por %p158, %p159
      %p162 = scmp.ne.s32.totalorder %s147, %s161
      %p163 = scmp.eq.s32.totalorder %s39, 0
      %p164 = por %p162, %p163
      %s166 = sadd.s32 %s165, 1
      %p169 = scmp.eq.s32.totalorder %s33, 7
      %p170 = scmp.ne.s32.totalorder %s165, %s167
      %p171 = scmp.eq.s32.totalorder %s33, 0
      %p172 = por %p170, %p171
      %p173 = scmp.ne.s32.totalorder %s165, %s167
      %p174 = scmp.eq.s32.totalorder %s38, 7
      %p175 = por %p173, %p174
      %p176 = scmp.ne.s32.totalorder %s167, %s168
      %p177 = scmp.eq.s32.totalorder %s38, 0
      %p178 = por %p176, %p177
      %p179 = scmp.ne.s32.totalorder %s167, %s168
      %p180 = scmp.eq.s32.totalorder %s39, 7
      %p181 = por %p179, %p180
      %p183 = scmp.ne.s32.totalorder %s168, %s182
      %p184 = scmp.eq.s32.totalorder %s39, 0
      %p185 = por %p183, %p184
      %s187 = sadd.s32 %s186, 1
      %p190 = scmp.eq.s32.totalorder %s33, 7
      %p191 = scmp.ne.s32.totalorder %s186, %s188
      %p192 = scmp.eq.s32.totalorder %s33, 0
      %p193 = por %p191, %p192
      %p194 = scmp.ne.s32.totalorder %s186, %s188
      %p195 = scmp.eq.s32.totalorder %s38, 7
      %p196 = por %p194, %p195
      %p197 = scmp.ne.s32.totalorder %s188, %s189
      %p198 = scmp.eq.s32.totalorder %s38, 0
      %p199 = por %p197, %p198
      %p200 = scmp.ne.s32.totalorder %s188, %s189
      %p201 = scmp.eq.s32.totalorder %s39, 7
      %p202 = por %p200, %p201
      %p204 = scmp.ne.s32.totalorder %s189, %s203
      %p205 = scmp.eq.s32.totalorder %s39, 0
      %p206 = por %p204, %p205
      %s208 = sadd.s32 %s207, 1
      %p211 = scmp.eq.s32.totalorder %s33, 7
      %p212 = scmp.ne.s32.totalorder %s207, %s209
      %p213 = scmp.eq.s32.totalorder %s33, 0
      %p214 = por %p212, %p213
      %p215 = scmp.ne.s32.totalorder %s207, %s209
      %p216 = scmp.eq.s32.totalorder %s38, 7
      %p217 = por %p215, %p216
      %p218 = scmp.ne.s32.totalorder %s209, %s210
      %p219 = scmp.eq.s32.totalorder %s38, 0
      %p220 = por %p218, %p219
      %p221 = scmp.ne.s32.totalorder %s209, %s210
      %p222 = scmp.eq.s32.totalorder %s39, 7
      %p223 = por %p221, %p222
      %p225 = scmp.ne.s32.totalorder %s210, %s224
      %p226 = scmp.eq.s32.totalorder %s39, 0
      %p227 = por %p225, %p226
      %s228 = ssub.s32 %s40, %s59
      %s229 = ssub.s32 %s41, %s55
      %s230 = sor.u32 %s228, %s229
      %p231 = scmp.eq.s32.totalorder %s230, 0
      %s233 = sadd.s32 %s232, 1
      %s234 = scalar_select %p231, %s232, %s233
      %p237 = pneg %p231
      %p238 = scmp.eq.s32.totalorder %s33, 7
      %p239 = por %p237, %p238
      %p240 = scmp.ne.s32.totalorder %s232, %s235
      %p241 = scmp.eq.s32.totalorder %s33, 0
      %p242 = por %p240, %p241
      %p243 = scmp.ne.s32.totalorder %s232, %s235
      %p244 = scmp.eq.s32.totalorder %s38, 7
      %p245 = por %p243, %p244
      %p246 = scmp.ne.s32.totalorder %s235, %s236
      %p247 = scmp.eq.s32.totalorder %s38, 0
      %p248 = por %p246, %p247
      %p249 = scmp.ne.s32.totalorder %s235, %s236
      %p250 = scmp.eq.s32.totalorder %s39, 7
      %p251 = por %p249, %p250
      %p253 = scmp.ne.s32.totalorder %s236, %s252
      %p254 = scmp.eq.s32.totalorder %s39, 0
      %p255 = por %p253, %p254
      %p256 = scmp.le.s32.totalorder 1, %s33
      %p257 = scmp.lt.s32.totalorder %s33, 9
      %p258 = pnand %p256, %p257
      %p259 = pneg %p258
      // Predicated region
      $region9: #{tpu_custom_call.1} parent=5 // pred_check
        _
      $region10: #{tpu_custom_call.1} parent=5 // pred_check_branch
        %261 = sbr.rel (%p258) target = $region12
      $region11: #{tpu_custom_call.1} parent=5 // pred_region
        %s262 = ssub.s32 %s33, 1
        // Predicated region
        $region13: #{tpu_custom_call.1} parent=11 // pred_check
          %p263 = pneg %p157
        $region14: #{tpu_custom_call.1} parent=11 // pred_check_branch
          %265 = sbr.rel (%p263) target = $region16
        $region15: #{tpu_custom_call.1} parent=11 // pred_region
          %267 = vsyncadd [#allocation15], 0
          %s268 = sshll.u32 %s4, 4
          %s269 = int_to_ptr.hbm [resolvable:$true] %s268
          %s270 = sshll.u32 [#allocation14], 4
          %s271 = int_to_ptr.vmem [resolvable:$true] %s270
          %276 = dma.hbm_to_vmem [thread:$0]  %s269, 512, %s271, [#allocation15], 128, 128, 8
        $region16: #{tpu_custom_call.1} parent=11 // pred_fallthru
          _
        // Predicated region
        $region17: #{tpu_custom_call.1} parent=11 // pred_check
          %p277 = pneg %p178
        $region18: #{tpu_custom_call.1} parent=11 // pred_check_branch
          %279 = sbr.rel (%p277) target = $region20
        $region19: #{tpu_custom_call.1} parent=11 // pred_region
          %281 = vsyncadd [#allocation15], 0
          %s282 = sshll.u32 %s5, 4
          %s283 = int_to_ptr.hbm [resolvable:$true] %s282
          %s284 = sshll.u32 [#allocation16], 4
          %s285 = int_to_ptr.vmem [resolvable:$true] %s284
          %290 = dma.hbm_to_vmem [thread:$0]  %s283, 512, %s285, [#allocation15], 128, 128, 8
        $region20: #{tpu_custom_call.1} parent=11 // pred_fallthru
          _
        // Predicated region
        $region21: #{tpu_custom_call.1} parent=11 // pred_check
          %p291 = pneg %p199
        $region22: #{tpu_custom_call.1} parent=11 // pred_check_branch
          %293 = sbr.rel (%p291) target = $region24
        $region23: #{tpu_custom_call.1} parent=11 // pred_region
          %295 = vsyncadd [#allocation18], 0
          %s296 = sshll.u32 %s6, 4
          %s297 = int_to_ptr.hbm [resolvable:$true] %s296
          %s298 = sshll.u32 [#allocation17], 4
          %s299 = int_to_ptr.vmem [resolvable:$true] %s298
          %304 = dma.hbm_to_vmem [thread:$0]  %s297, 512, %s299, [#allocation18], 128, 128, 8
        $region24: #{tpu_custom_call.1} parent=11 // pred_fallthru
          _
        // Predicated region
        $region25: #{tpu_custom_call.1} parent=11 // pred_check
          %p305 = pneg %p220
        $region26: #{tpu_custom_call.1} parent=11 // pred_check_branch
          %307 = sbr.rel (%p305) target = $region28
        $region27: #{tpu_custom_call.1} parent=11 // pred_region
          %309 = vsyncadd [#allocation18], 0
          %s310 = sshll.u32 %s7, 4
          %s311 = int_to_ptr.hbm [resolvable:$true] %s310
          %s312 = sshll.u32 [#allocation19], 4
          %s313 = int_to_ptr.vmem [resolvable:$true] %s312
          %318 = dma.hbm_to_vmem [thread:$0]  %s311, 512, %s313, [#allocation18], 128, 128, 8
        $region28: #{tpu_custom_call.1} parent=11 // pred_fallthru
          _
      $region12: #{tpu_custom_call.1} parent=5 // pred_fallthru
        _
      %p319 = scmp.lt.s32.totalorder %s33, 8
      // Predicated region
      $region29: #{tpu_custom_call.1} parent=5 // pred_check
        %p320 = pneg %p319
      $region30: #{tpu_custom_call.1} parent=5 // pred_check_branch
        %322 = sbr.rel (%p320) target = $region32
      $region31: #{tpu_custom_call.1} parent=5 // pred_region
        // Predicated region
        $region33: #{tpu_custom_call.1} parent=31 // pred_check
          %p323 = pneg %p74
        $region34: #{tpu_custom_call.1} parent=31 // pred_check_branch
          %325 = sbr.rel (%p323) target = $region36
        $region35: #{tpu_custom_call.1} parent=31 // pred_region
          %s326 = sand.u32 %s64, 1
          %s327 = scalar_lea.sflag [#allocation9], %s326
          %s328 = sand.u32 %s64, 1
          %s329 = smul.addr %s328, 8
          %s330 = scalar_lea.vmem [#allocation8], %s329
          %332 = vsyncadd %s327, 0
          %s333 = smul.addr %s40, 2
          %s334 = sadd.s32 %s41, %s333
          %s335 = smul.addr %s334, 8
          %s336 = scalar_lea.hbm %s1, %s335
          %s338 = sshll.u32 %s336, 4
          %s339 = int_to_ptr.hbm [resolvable:$true] %s338
          %s340 = sshll.u32 %s330, 4
          %s341 = int_to_ptr.vmem [resolvable:$true] %s340
          %343 = dma.hbm_to_vmem [thread:$0]  %s339, 128, %s341, %s327
        $region36: #{tpu_custom_call.1} parent=31 // pred_fallthru
          _
        // Predicated region
        $region37: #{tpu_custom_call.1} parent=31 // pred_check
          %p344 = pneg %p102
        $region38: #{tpu_custom_call.1} parent=31 // pred_check_branch
          %346 = sbr.rel (%p344) target = $region40
        $region39: #{tpu_custom_call.1} parent=31 // pred_region
          %s347 = sand.u32 %s33, 1
          %s348 = scalar_lea.sflag [#allocation12], %s347
          %s349 = sand.u32 %s92, 1
          %s350 = smul.addr %s349, 8
          %s351 = scalar_lea.vmem [#allocation11], %s350
          %353 = vsyncadd %s348, 0
          %s354 = smul.addr %s40, 2
          %s355 = sadd.s32 %s42, %s354
          %s356 = smul.addr %s355, 8
          %s357 = scalar_lea.hbm %s2, %s356
          %s359 = sshll.u32 %s357, 4
          %s360 = int_to_ptr.hbm [resolvable:$true] %s359
          %s361 = sshll.u32 %s351, 4
          %s362 = int_to_ptr.vmem [resolvable:$true] %s361
          %364 = dma.hbm_to_vmem [thread:$0]  %s360, 128, %s362, %s348
        $region40: #{tpu_custom_call.1} parent=31 // pred_fallthru
          _
        // Predicated region
        $region41: #{tpu_custom_call.1} parent=31 // pred_check
          %p365 = pneg %p130
        $region42: #{tpu_custom_call.1} parent=31 // pred_check_branch
          %367 = sbr.rel (%p365) target = $region44
        $region43: #{tpu_custom_call.1} parent=31 // pred_region
          %s368 = sand.u32 %s33, 1
          %s369 = scalar_lea.sflag [#allocation12], %s368
          %s370 = sand.u32 %s120, 1
          %s371 = smul.addr %s370, 8
          %s372 = scalar_lea.vmem [#allocation13], %s371
          %374 = vsyncadd %s369, 0
          %s375 = smul.addr %s40, 2
          %s376 = sadd.s32 %s42, %s375
          %s377 = smul.addr %s376, 8
          %s378 = scalar_lea.hbm %s3, %s377
          %s380 = sshll.u32 %s378, 4
          %s381 = int_to_ptr.hbm [resolvable:$true] %s380
          %s382 = sshll.u32 %s372, 4
          %s383 = int_to_ptr.vmem [resolvable:$true] %s382
          %385 = dma.hbm_to_vmem [thread:$0]  %s381, 128, %s383, %s369
        $region44: #{tpu_custom_call.1} parent=31 // pred_fallthru
          _
      $region32: #{tpu_custom_call.1} parent=5 // pred_fallthru
        _
      %p386 = scmp.le.s32.totalorder 1, %s33
      %p387 = scmp.lt.s32.totalorder %s33, 9
      %p388 = pnand %p386, %p387
      %p389 = pneg %p388
      // Predicated region
      $region45: #{tpu_custom_call.1} parent=5 // pred_check
        _
      $region46: #{tpu_custom_call.1} parent=5 // pred_check_branch
        %391 = sbr.rel (%p388) target = $region48
      $region47: #{tpu_custom_call.1} parent=5 // pred_region
        %s392 = ssub.s32 %s33, 1
        %s393 = sand.u32 %s67, 1
        %s394 = scalar_lea.sflag [#allocation9], %s393
        %s395 = sand.u32 %s67, 1
        %s396 = smul.addr %s395, 8
        %s397 = scalar_lea.vmem [#allocation8], %s396
        // Predicated region
        $region49: #{tpu_custom_call.1} parent=47 // pred_check
          %p398 = pneg %p80
        $region50: #{tpu_custom_call.1} parent=47 // pred_check_branch
          %400 = sbr.rel (%p398) target = $region52
        $region51: #{tpu_custom_call.1} parent=47 // pred_region
          %402 = dma.done %s394, 128
        $region52: #{tpu_custom_call.1} parent=47 // pred_fallthru
          _
        %s403 = sand.u32 %s38, 1
        %s404 = scalar_lea.sflag [#allocation12], %s403
        %s405 = sand.u32 %s95, 1
        %s406 = smul.addr %s405, 8
        %s407 = scalar_lea.vmem [#allocation11], %s406
        // Predicated region
        $region53: #{tpu_custom_call.1} parent=47 // pred_check
          %p408 = pneg %p108
        $region54: #{tpu_custom_call.1} parent=47 // pred_check_branch
          %410 = sbr.rel (%p408) target = $region56
        $region55: #{tpu_custom_call.1} parent=47 // pred_region
          %412 = dma.done %s404, 128
        $region56: #{tpu_custom_call.1} parent=47 // pred_fallthru
          _
        %s413 = sand.u32 %s38, 1
        %s414 = scalar_lea.sflag [#allocation12], %s413
        %s415 = sand.u32 %s123, 1
        %s416 = smul.addr %s415, 8
        %s417 = scalar_lea.vmem [#allocation13], %s416
        // Predicated region
        $region57: #{tpu_custom_call.1} parent=47 // pred_check
          %p418 = pneg %p136
        $region58: #{tpu_custom_call.1} parent=47 // pred_check_branch
          %420 = sbr.rel (%p418) target = $region60
        $region59: #{tpu_custom_call.1} parent=47 // pred_region
          %422 = dma.done %s414, 128
        $region60: #{tpu_custom_call.1} parent=47 // pred_fallthru
          _
        // Predicated region
        $region61: #{tpu_custom_call.1} parent=47 // pred_check
          %p423 = pneg %p157
        $region62: #{tpu_custom_call.1} parent=47 // pred_check_branch
          %425 = sbr.rel (%p423) target = $region64
        $region63: #{tpu_custom_call.1} parent=47 // pred_region
          %427 = dma.done [#allocation15], 512
        $region64: #{tpu_custom_call.1} parent=47 // pred_fallthru
          _
        // Predicated region
        $region65: #{tpu_custom_call.1} parent=47 // pred_check
          %p428 = pneg %p178
        $region66: #{tpu_custom_call.1} parent=47 // pred_check_branch
          %430 = sbr.rel (%p428) target = $region68
        $region67: #{tpu_custom_call.1} parent=47 // pred_region
          %432 = dma.done [#allocation15], 512
        $region68: #{tpu_custom_call.1} parent=47 // pred_fallthru
          _
        // Predicated region
        $region69: #{tpu_custom_call.1} parent=47 // pred_check
          %p433 = pneg %p199
        $region70: #{tpu_custom_call.1} parent=47 // pred_check_branch
          %435 = sbr.rel (%p433) target = $region72
        $region71: #{tpu_custom_call.1} parent=47 // pred_region
          %437 = dma.done [#allocation18], 512
        $region72: #{tpu_custom_call.1} parent=47 // pred_fallthru
          _
        // Predicated region
        $region73: #{tpu_custom_call.1} parent=47 // pred_check
          %p438 = pneg %p220
        $region74: #{tpu_custom_call.1} parent=47 // pred_check_branch
          %440 = sbr.rel (%p438) target = $region76
        $region75: #{tpu_custom_call.1} parent=47 // pred_region
          %442 = dma.done [#allocation18], 512
        $region76: #{tpu_custom_call.1} parent=47 // pred_fallthru
          _
        %s443 = sand.u32 %s67, 1
        %s444 = scalar_lea.sflag [#allocation9], %s443
        %s445 = sand.u32 %s67, 1
        %s446 = smul.addr %s445, 8
        %s447 = scalar_lea.vmem [#allocation8], %s446
        %p448 = pneg %p80
        %p449 = pneg %p77
        %s450 = sand.u32 %s38, 1
        %s451 = scalar_lea.sflag [#allocation12], %s450
        %s452 = sand.u32 %s95, 1
        %s453 = smul.addr %s452, 8
        %s454 = scalar_lea.vmem [#allocation11], %s453
        %p455 = pneg %p108
        %p456 = pneg %p105
        %s457 = sand.u32 %s38, 1
        %s458 = scalar_lea.sflag [#allocation12], %s457
        %s459 = sand.u32 %s123, 1
        %s460 = smul.addr %s459, 8
        %s461 = scalar_lea.vmem [#allocation13], %s460
        %p462 = pneg %p136
        %p463 = pneg %p133
        %p464 = pneg %p157
        %p465 = pneg %p154
        %p466 = pneg %p178
        %p467 = pneg %p175
        %p468 = pneg %p199
        %p469 = pneg %p196
        %p470 = pneg %p220
        %p471 = pneg %p217
        %p472 = pneg %p248
        %p473 = pneg %p245
        %s474 = sand.u32 %s235, 1
        %s475 = scalar_lea.sflag [#allocation10], %s474
        %s476 = sand.u32 %s235, 1
        %s477 = smul.addr %s476, 8
        %s478 = scalar_lea.vmem [#allocation20], %s477
        %s479 = sld [smem:[#allocation7 + %s43]]
        %p480 = scmp.eq.s32.totalorder %s45, 0
        // Predicated region
        $region77: #{tpu_custom_call.1} parent=47 // pred_check
          %p481 = pneg %p480
        $region78: #{tpu_custom_call.1} parent=47 // pred_check_branch
          %483 = sbr.rel (%p481) target = $region80
        $region79: #{tpu_custom_call.1} parent=47 // pred_region
          %v484 = vld [vmem:[%s397] sm:$0xff]
          %v485 = vld [vmem:[#allocation14] sm:$0xff]
          %v486 = vld [vmem:[#allocation14 + $0x8] sm:$0xff]
          %v487 = vld [vmem:[#allocation14 + $0x10] sm:$0xff]
          %v488 = vld [vmem:[#allocation14 + $0x18] sm:$0xff]
          %vm489 = vcmask 261120
          %v491 = vsel %vm489, %v484, 0
          %493 = vmatpush.msra.mxu0 0.0
          %494 = vmatpush.msra.mxu0 0.0
          %495 = vmatpush.msra.mxu0 0.0
          %496 = vmatpush.msra.mxu0 0.0
          %497 = vmatpush.msra.mxu0 0.0
          %498 = vmatpush.msra.mxu0 0.0
          %499 = vmatpush.msra.mxu0 0.0
          %500 = vmatpush.msra.mxu0 0.0
          %501 = vmatpush.msra.mxu0 0.0
          %502 = vmatpush.msra.mxu0 0.0
          %503 = vmatpush.msra.mxu0 0.0
          %504 = vmatpush.msra.mxu0 0.0
          %505 = vmatpush.msra.mxu0 %v488
          %506 = vmatpush.msra.mxu0 %v487
          %507 = vmatpush.msra.mxu0 %v486
          %508 = vmatpush.msra.mxu0 %v485
          %509 = vmatmul.f32.gmra.mxu0 %v491
          %v510 = vpop.f32.mrf.mxu0
          %v511 = vadd.f32 0.0, %v510
          %512 = vdwg.mxu0
          %513 = vst.msk [vmem:[#allocation2] sm:$0xff] %vm489, %v511
          %vm514 = vcmask 7168
          %515 = vst.msk [vmem:[#allocation3] sm:$0xff] %vm514, -1e+30
          %516 = vst.msk [vmem:[#allocation3 + $0x8] sm:$0xff] %vm514, -1e+30
          %517 = vst.msk [vmem:[#allocation3 + $0x10] sm:$0xff] %vm514, -1e+30
          %518 = vst.msk [vmem:[#allocation3 + $0x18] sm:$0xff] %vm514, -1e+30
          %519 = vst.msk [vmem:[#allocation4] sm:$0xff] %vm514, 0.0
          %520 = vst.msk [vmem:[#allocation4 + $0x8] sm:$0xff] %vm514, 0.0
          %521 = vst.msk [vmem:[#allocation4 + $0x10] sm:$0xff] %vm514, 0.0
          %522 = vst.msk [vmem:[#allocation4 + $0x18] sm:$0xff] %vm514, 0.0
          %523 = vst.msk [vmem:[#allocation5] sm:$0xff] %vm489, 0.0
        $region80: #{tpu_custom_call.1} parent=47 // pred_fallthru
          _
        %v524 = vld [vmem:[%s407] sm:$0xff]
        %v525 = vld [vmem:[#allocation16] sm:$0xff]
        %v526 = vld [vmem:[#allocation16 + $0x8] sm:$0xff]
        %v527 = vld [vmem:[#allocation16 + $0x10] sm:$0xff]
        %v528 = vld [vmem:[#allocation16 + $0x18] sm:$0xff]
        %vm529 = vcmask 261120
        %v531 = vsel %vm529, %v524, 0
        %533 = vmatpush.msra.mxu0 0.0
        %534 = vmatpush.msra.mxu0 0.0
        %535 = vmatpush.msra.mxu0 0.0
        %536 = vmatpush.msra.mxu0 0.0
        %537 = vmatpush.msra.mxu0 0.0
        %538 = vmatpush.msra.mxu0 0.0
        %539 = vmatpush.msra.mxu0 0.0
        %540 = vmatpush.msra.mxu0 0.0
        %541 = vmatpush.msra.mxu0 0.0
        %542 = vmatpush.msra.mxu0 0.0
        %543 = vmatpush.msra.mxu0 0.0
        %544 = vmatpush.msra.mxu0 0.0
        %545 = vmatpush.msra.mxu0 %v528
        %546 = vmatpush.msra.mxu0 %v527
        %547 = vmatpush.msra.mxu0 %v526
        %548 = vmatpush.msra.mxu0 %v525
        %549 = vmatmul.f32.gmra.mxu0 %v531
        %v550 = vpop.f32.mrf.mxu0
        %v551 = vadd.f32 0.0, %v550
        %552 = vdwg.mxu0
        %v553 = vld [vmem:[%s417] sm:$0xff]
        %v554 = vld [vmem:[#allocation17] sm:$0xff]
        %v555 = vld [vmem:[#allocation17 + $0x8] sm:$0xff]
        %v556 = vld [vmem:[#allocation17 + $0x10] sm:$0xff]
        %v557 = vld [vmem:[#allocation17 + $0x18] sm:$0xff]
        %v559 = vsel %vm529, %v553, 0
        %561 = vmatpush.msra.mxu0 0.0
        %562 = vmatpush.msra.mxu0 0.0
        %563 = vmatpush.msra.mxu0 0.0
        %564 = vmatpush.msra.mxu0 0.0
        %565 = vmatpush.msra.mxu0 0.0
        %566 = vmatpush.msra.mxu0 0.0
        %567 = vmatpush.msra.mxu0 0.0
        %568 = vmatpush.msra.mxu0 0.0
        %569 = vmatpush.msra.mxu0 0.0
        %570 = vmatpush.msra.mxu0 0.0
        %571 = vmatpush.msra.mxu0 0.0
        %572 = vmatpush.msra.mxu0 0.0
        %573 = vmatpush.msra.mxu0 %v557
        %574 = vmatpush.msra.mxu0 %v556
        %575 = vmatpush.msra.mxu0 %v555
        %576 = vmatpush.msra.mxu0 %v554
        %577 = vmatmul.f32.gmra.mxu0 %v559
        %v578 = vpop.f32.mrf.mxu0
        %v579 = vadd.f32 0.0, %v578
        %580 = vdwg.mxu0
        %s581 = smul.u32 %s45, 8
        %v582 = vlaneseq
        %v583 = vand.u32 %v582, 127
        %v584 = vstv %s581
        %v585 = vadd.s32 %v584, %v583
        %v586 = vstv %s479
        %vm587 = vcmp.lt.s32.totalorder %v585, %v586
        %v588 = vld [vmem:[#allocation2] sm:$0xff]
        %vm589 = vcmask 64512
        %v591 = vsel %vm589, %v588, 0
        %v594 = vsel %vm589, %v551, 0
        %596 = vmatpush.xpose.msra.mxu0 0.0
        %597 = vmatpush.xpose.msra.mxu0 0.0
        %598 = vmatpush.xpose.msra.mxu0 0.0
        %599 = vmatpush.xpose.msra.mxu0 0.0
        %600 = vmatpush.xpose.msra.mxu0 0.0
        %601 = vmatpush.xpose.msra.mxu0 0.0
        %602 = vmatpush.xpose.msra.mxu0 0.0
        %603 = vmatpush.xpose.msra.mxu0 0.0
        %604 = vmatpush.xpose.msra.mxu0 0.0
        %605 = vmatpush.xpose.msra.mxu0 0.0
        %606 = vmatpush.xpose.msra.mxu0 0.0
        %607 = vmatpush.xpose.msra.mxu0 0.0
        %608 = vmatpush.xpose.msra.mxu0 0.0
        %609 = vmatpush.xpose.msra.mxu0 0.0
        %610 = vmatpush.xpose.msra.mxu0 0.0
        %611 = vmatpush.xpose.msra.mxu0 %v594
        %612 = vmatmul.f32.gmra.mxu0 %v591
        %v613 = vpop.f32.mrf.mxu0
        %v614 = vadd.f32 0.0, %v613
        %615 = vdwg.mxu0
        %v616 = vsel %vm587, 1, 0
        %vm617 = vcmp.eq.s32.totalorder %v616, 1
        %v618 = vsel %vm617, %v614, -1000000.0
        %v619 = vld [vmem:[#allocation3] sm:$0xff]
        %v620 = vsel %vm589, %v618, -inf
        %621 = vmax.xlane.f32.xlu0 %v620
        %v622 = vpop.xlane.xlu0 %621
        %v623 = vmax.f32 %v619, %v622
        %v624 = vsub.f32 %v619, %v623
        %v625 = vmul.f32 %v624, 1.442695
        %v626 = vpow.pop %v625
        %628 = vset.pattern.permute.xlu0 0
        %629 = vperm.xlu0 %628, %v623
        %v630 = vpop.permute.xlu0 %629
        %v632 = vsub.f32 %v618, %v630
        %v633 = vmul.f32 %v632, 1.442695
        %v634 = vpow.pop %v633
        %v635 = vld [vmem:[#allocation4] sm:$0xff]
        %v636 = vmul.f32 %v626, %v635
        %v637 = vsel %vm589, %v634, 0.0
        %638 = vadd.xlane.f32.xlu0 %v637
        %v639 = vpop.xlane.xlu0 %638
        %v640 = vadd.f32 %v636, %v639
        %vm641 = vcmask 7168
        %642 = vst.msk [vmem:[#allocation4] sm:$0xff] %vm641, %v640
        %643 = vst.msk [vmem:[#allocation3] sm:$0xff] %vm641, %v623
        %v645 = vsel %vm589, %v634, 0
        %647 = vmatpush.msra.mxu0 0.0
        %648 = vmatpush.msra.mxu0 0.0
        %649 = vmatpush.msra.mxu0 0.0
        %650 = vmatpush.msra.mxu0 0.0
        %651 = vmatpush.msra.mxu0 0.0
        %652 = vmatpush.msra.mxu0 0.0
        %653 = vmatpush.msra.mxu0 0.0
        %654 = vmatpush.msra.mxu0 0.0
        %655 = vmatpush.msra.mxu0 0.0
        %656 = vmatpush.msra.mxu0 0.0
        %657 = vmatpush.msra.mxu0 0.0
        %658 = vmatpush.msra.mxu0 0.0
        %659 = vmatpush.msra.mxu0 0.0
        %660 = vmatpush.msra.mxu0 0.0
        %661 = vmatpush.msra.mxu0 0.0
        %662 = vmatpush.msra.mxu0 %v579
        %663 = vmatmul.f32.gmra.mxu0 %v645
        %v664 = vpop.f32.mrf.mxu0
        %v665 = vadd.f32 0.0, %v664
        %666 = vdwg.mxu0
        %v667 = vld [vmem:[#allocation5] sm:$0xff]
        %669 = vset.pattern.permute.xlu0 0
        %670 = vperm.xlu0 %669, %v626
        %v671 = vpop.permute.xlu0 %670
        %v673 = vmul.f32 %v671, %v667
        %v674 = vadd.f32 %v673, %v665
        %675 = vst.msk [vmem:[#allocation5] sm:$0xff] %vm589, %v674
        %676 = vrot.lane.b32.xlu0 %v588, 120
        %v677 = vpop.permute.xlu0 %676
        %678 = vrot.lane.b32.xlu0 %v551, 120
        %v679 = vpop.permute.xlu0 %678
        %v680 = vsel %vm589, %v677, 0
        %v682 = vsel %vm589, %v679, 0
        %684 = vmatpush.xpose.msra.mxu0 0.0
        %685 = vmatpush.xpose.msra.mxu0 0.0
        %686 = vmatpush.xpose.msra.mxu0 0.0
        %687 = vmatpush.xpose.msra.mxu0 0.0
        %688 = vmatpush.xpose.msra.mxu0 0.0
        %689 = vmatpush.xpose.msra.mxu0 0.0
        %690 = vmatpush.xpose.msra.mxu0 0.0
        %691 = vmatpush.xpose.msra.mxu0 0.0
        %692 = vmatpush.xpose.msra.mxu0 0.0
        %693 = vmatpush.xpose.msra.mxu0 0.0
        %694 = vmatpush.xpose.msra.mxu0 0.0
        %695 = vmatpush.xpose.msra.mxu0 0.0
        %696 = vmatpush.xpose.msra.mxu0 0.0
        %697 = vmatpush.xpose.msra.mxu0 0.0
        %698 = vmatpush.xpose.msra.mxu0 0.0
        %699 = vmatpush.xpose.msra.mxu0 %v682
        %700 = vmatmul.f32.gmra.mxu0 %v680
        %v701 = vpop.f32.mrf.mxu0
        %v702 = vadd.f32 0.0, %v701
        %703 = vdwg.mxu0
        %v704 = vsel %vm617, %v702, -1000000.0
        %s705 = scalar_lea.vmem [#allocation3], 8
        %v706 = vld [vmem:[%s705] sm:$0xff]
        %v707 = vsel %vm589, %v704, -inf
        %708 = vmax.xlane.f32.xlu0 %v707
        %v709 = vpop.xlane.xlu0 %708
        %v710 = vmax.f32 %v706, %v709
        %v711 = vsub.f32 %v706, %v710
        %v712 = vmul.f32 %v711, 1.442695
        %v713 = vpow.pop %v712
        %715 = vset.pattern.permute.xlu0 0
        %716 = vperm.xlu0 %715, %v710
        %v717 = vpop.permute.xlu0 %716
        %v719 = vsub.f32 %v704, %v717
        %v720 = vmul.f32 %v719, 1.442695
        %v721 = vpow.pop %v720
        %s722 = scalar_lea.vmem [#allocation4], 8
        %v723 = vld [vmem:[%s722] sm:$0xff]
        %v724 = vmul.f32 %v713, %v723
        %v725 = vsel %vm589, %v721, 0.0
        %726 = vadd.xlane.f32.xlu0 %v725
        %v727 = vpop.xlane.xlu0 %726
        %v728 = vadd.f32 %v724, %v727
        %729 = vst.msk [vmem:[%s722] sm:$0xff] %vm641, %v728
        %730 = vst.msk [vmem:[%s705] sm:$0xff] %vm641, %v710
        %732 = vrot.lane.b32.xlu0 %v579, 120
        %v733 = vpop.permute.xlu0 %732
        %v736 = vsel %vm589, %v721, 0
        %738 = vmatpush.msra.mxu0 0.0
        %739 = vmatpush.msra.mxu0 0.0
        %740 = vmatpush.msra.mxu0 0.0
        %741 = vmatpush.msra.mxu0 0.0
        %742 = vmatpush.msra.mxu0 0.0
        %743 = vmatpush.msra.mxu0 0.0
        %744 = vmatpush.msra.mxu0 0.0
        %745 = vmatpush.msra.mxu0 0.0
        %746 = vmatpush.msra.mxu0 0.0
        %747 = vmatpush.msra.mxu0 0.0
        %748 = vmatpush.msra.mxu0 0.0
        %749 = vmatpush.msra.mxu0 0.0
        %750 = vmatpush.msra.mxu0 0.0
        %751 = vmatpush.msra.mxu0 0.0
        %752 = vmatpush.msra.mxu0 0.0
        %753 = vmatpush.msra.mxu0 %v733
        %754 = vmatmul.f32.gmra.mxu0 %v736
        %v755 = vpop.f32.mrf.mxu0
        %v756 = vadd.f32 0.0, %v755
        %757 = vdwg.mxu0
        %v758 = vld [vmem:[#allocation5] sm:$0xff]
        %760 = vset.pattern.permute.xlu0 0
        %761 = vperm.xlu0 %760, %v713
        %v762 = vpop.permute.xlu0 %761
        %v764 = vmul.f32 %v762, %v758
        %766 = vrot.lane.b32.xlu0 %v756, 8
        %v767 = vpop.permute.xlu0 %766
        %v769 = vadd.f32 %v764, %v767
        %vm770 = vcmask 130112
        %771 = vst.msk [vmem:[#allocation5] sm:$0xff] %vm770, %v769
        %772 = vrot.lane.b32.xlu0 %v588, 112
        %v773 = vpop.permute.xlu0 %772
        %774 = vrot.lane.b32.xlu0 %v551, 112
        %v775 = vpop.permute.xlu0 %774
        %v776 = vsel %vm589, %v773, 0
        %v778 = vsel %vm589, %v775, 0
        %780 = vmatpush.xpose.msra.mxu0 0.0
        %781 = vmatpush.xpose.msra.mxu0 0.0
        %782 = vmatpush.xpose.msra.mxu0 0.0
        %783 = vmatpush.xpose.msra.mxu0 0.0
        %784 = vmatpush.xpose.msra.mxu0 0.0
        %785 = vmatpush.xpose.msra.mxu0 0.0
        %786 = vmatpush.xpose.msra.mxu0 0.0
        %787 = vmatpush.xpose.msra.mxu0 0.0
        %788 = vmatpush.xpose.msra.mxu0 0.0
        %789 = vmatpush.xpose.msra.mxu0 0.0
        %790 = vmatpush.xpose.msra.mxu0 0.0
        %791 = vmatpush.xpose.msra.mxu0 0.0
        %792 = vmatpush.xpose.msra.mxu0 0.0
        %793 = vmatpush.xpose.msra.mxu0 0.0
        %794 = vmatpush.xpose.msra.mxu0 0.0
        %795 = vmatpush.xpose.msra.mxu0 %v778
        %796 = vmatmul.f32.gmra.mxu0 %v776
        %v797 = vpop.f32.mrf.mxu0
        %v798 = vadd.f32 0.0, %v797
        %799 = vdwg.mxu0
        %v800 = vsel %vm617, %v798, -1000000.0
        %s801 = scalar_lea.vmem [#allocation3], 16
        %v802 = vld [vmem:[%s801] sm:$0xff]
        %v803 = vsel %vm589, %v800, -inf
        %804 = vmax.xlane.f32.xlu0 %v803
        %v805 = vpop.xlane.xlu0 %804
        %v806 = vmax.f32 %v802, %v805
        %v807 = vsub.f32 %v802, %v806
        %v808 = vmul.f32 %v807, 1.442695
        %v809 = vpow.pop %v808
        %811 = vset.pattern.permute.xlu0 0
        %812 = vperm.xlu0 %811, %v806
        %v813 = vpop.permute.xlu0 %812
        %v815 = vsub.f32 %v800, %v813
        %v816 = vmul.f32 %v815, 1.442695
        %v817 = vpow.pop %v816
        %s818 = scalar_lea.vmem [#allocation4], 16
        %v819 = vld [vmem:[%s818] sm:$0xff]
        %v820 = vmul.f32 %v809, %v819
        %v821 = vsel %vm589, %v817, 0.0
        %822 = vadd.xlane.f32.xlu0 %v821
        %v823 = vpop.xlane.xlu0 %822
        %v824 = vadd.f32 %v820, %v823
        %825 = vst.msk [vmem:[%s818] sm:$0xff] %vm641, %v824
        %826 = vst.msk [vmem:[%s801] sm:$0xff] %vm641, %v806
        %827 = vrot.lane.b32.xlu0 %v579, 112
        %v828 = vpop.permute.xlu0 %827
        %v831 = vsel %vm589, %v817, 0
        %833 = vmatpush.msra.mxu0 0.0
        %834 = vmatpush.msra.mxu0 0.0
        %835 = vmatpush.msra.mxu0 0.0
        %836 = vmatpush.msra.mxu0 0.0
        %837 = vmatpush.msra.mxu0 0.0
        %838 = vmatpush.msra.mxu0 0.0
        %839 = vmatpush.msra.mxu0 0.0
        %840 = vmatpush.msra.mxu0 0.0
        %841 = vmatpush.msra.mxu0 0.0
        %842 = vmatpush.msra.mxu0 0.0
        %843 = vmatpush.msra.mxu0 0.0
        %844 = vmatpush.msra.mxu0 0.0
        %845 = vmatpush.msra.mxu0 0.0
        %846 = vmatpush.msra.mxu0 0.0
        %847 = vmatpush.msra.mxu0 0.0
        %848 = vmatpush.msra.mxu0 %v828
        %849 = vmatmul.f32.gmra.mxu0 %v831
        %v850 = vpop.f32.mrf.mxu0
        %v851 = vadd.f32 0.0, %v850
        %852 = vdwg.mxu0
        %v853 = vld [vmem:[#allocation5] sm:$0xff]
        %855 = vset.pattern.permute.xlu0 0
        %856 = vperm.xlu0 %855, %v809
        %v857 = vpop.permute.xlu0 %856
        %v859 = vmul.f32 %v857, %v853
        %861 = vrot.lane.b32.xlu0 %v851, 16
        %v862 = vpop.permute.xlu0 %861
        %v864 = vadd.f32 %v859, %v862
        %vm865 = vcmask 195712
        %866 = vst.msk [vmem:[#allocation5] sm:$0xff] %vm865, %v864
        %867 = vrot.lane.b32.xlu0 %v588, 104
        %v868 = vpop.permute.xlu0 %867
        %869 = vrot.lane.b32.xlu0 %v551, 104
        %v870 = vpop.permute.xlu0 %869
        %v871 = vsel %vm589, %v868, 0
        %v873 = vsel %vm589, %v870, 0
        %875 = vmatpush.xpose.msra.mxu0 0.0
        %876 = vmatpush.xpose.msra.mxu0 0.0
        %877 = vmatpush.xpose.msra.mxu0 0.0
        %878 = vmatpush.xpose.msra.mxu0 0.0
        %879 = vmatpush.xpose.msra.mxu0 0.0
        %880 = vmatpush.xpose.msra.mxu0 0.0
        %881 = vmatpush.xpose.msra.mxu0 0.0
        %882 = vmatpush.xpose.msra.mxu0 0.0
        %883 = vmatpush.xpose.msra.mxu0 0.0
        %884 = vmatpush.xpose.msra.mxu0 0.0
        %885 = vmatpush.xpose.msra.mxu0 0.0
        %886 = vmatpush.xpose.msra.mxu0 0.0
        %887 = vmatpush.xpose.msra.mxu0 0.0
        %888 = vmatpush.xpose.msra.mxu0 0.0
        %889 = vmatpush.xpose.msra.mxu0 0.0
        %890 = vmatpush.xpose.msra.mxu0 %v873
        %891 = vmatmul.f32.gmra.mxu0 %v871
        %v892 = vpop.f32.mrf.mxu0
        %v893 = vadd.f32 0.0, %v892
        %894 = vdwg.mxu0
        %v895 = vsel %vm617, %v893, -1000000.0
        %s896 = scalar_lea.vmem [#allocation3], 24
        %v897 = vld [vmem:[%s896] sm:$0xff]
        %v898 = vsel %vm589, %v895, -inf
        %899 = vmax.xlane.f32.xlu0 %v898
        %v900 = vpop.xlane.xlu0 %899
        %v901 = vmax.f32 %v897, %v900
        %v902 = vsub.f32 %v897, %v901
        %v903 = vmul.f32 %v902, 1.442695
        %v904 = vpow.pop %v903
        %906 = vset.pattern.permute.xlu0 0
        %907 = vperm.xlu0 %906, %v901
        %v908 = vpop.permute.xlu0 %907
        %v910 = vsub.f32 %v895, %v908
        %v911 = vmul.f32 %v910, 1.442695
        %v912 = vpow.pop %v911
        %s913 = scalar_lea.vmem [#allocation4], 24
        %v914 = vld [vmem:[%s913] sm:$0xff]
        %v915 = vmul.f32 %v904, %v914
        %v916 = vsel %vm589, %v912, 0.0
        %917 = vadd.xlane.f32.xlu0 %v916
        %v918 = vpop.xlane.xlu0 %917
        %v919 = vadd.f32 %v915, %v918
        %920 = vst.msk [vmem:[%s913] sm:$0xff] %vm641, %v919
        %921 = vst.msk [vmem:[%s896] sm:$0xff] %vm641, %v901
        %922 = vrot.lane.b32.xlu0 %v579, 104
        %v923 = vpop.permute.xlu0 %922
        %v926 = vsel %vm589, %v912, 0
        %928 = vmatpush.msra.mxu0 0.0
        %929 = vmatpush.msra.mxu0 0.0
        %930 = vmatpush.msra.mxu0 0.0
        %931 = vmatpush.msra.mxu0 0.0
        %932 = vmatpush.msra.mxu0 0.0
        %933 = vmatpush.msra.mxu0 0.0
        %934 = vmatpush.msra.mxu0 0.0
        %935 = vmatpush.msra.mxu0 0.0
        %936 = vmatpush.msra.mxu0 0.0
        %937 = vmatpush.msra.mxu0 0.0
        %938 = vmatpush.msra.mxu0 0.0
        %939 = vmatpush.msra.mxu0 0.0
        %940 = vmatpush.msra.mxu0 0.0
        %941 = vmatpush.msra.mxu0 0.0
        %942 = vmatpush.msra.mxu0 0.0
        %943 = vmatpush.msra.mxu0 %v923
        %944 = vmatmul.f32.gmra.mxu0 %v926
        %v945 = vpop.f32.mrf.mxu0
        %v946 = vadd.f32 0.0, %v945
        %947 = vdwg.mxu0
        %v948 = vld [vmem:[#allocation5] sm:$0xff]
        %950 = vset.pattern.permute.xlu0 0
        %951 = vperm.xlu0 %950, %v904
        %v952 = vpop.permute.xlu0 %951
        %v954 = vmul.f32 %v952, %v948
        %956 = vrot.lane.b32.xlu0 %v946, 24
        %v957 = vpop.permute.xlu0 %956
        %v959 = vadd.f32 %v954, %v957
        %vm960 = vcmask 261312
        %961 = vst.msk [vmem:[#allocation5] sm:$0xff] %vm960, %v959
        %p962 = scmp.eq.s32.totalorder %s45, 1
        // Predicated region
        $region81: #{tpu_custom_call.1} parent=47 // pred_check
          %p963 = pneg %p962
        $region82: #{tpu_custom_call.1} parent=47 // pred_check_branch
          %965 = sbr.rel (%p963) target = $region84
        $region83: #{tpu_custom_call.1} parent=47 // pred_region
          %v966 = vld [vmem:[#allocation4] sm:$0xff]
          %v967 = vrcp.pop %v966
          %v968 = vmul.f32 %v966, %v967
          %v969 = vsub.f32 1.0, %v968
          %v970 = vmul.f32 %v967, %v969
          %v971 = vadd.f32 %v967, %v970
          %vm972 = vweird.f32 %v966
          %vm973 = vweird.f32 %v967
          %vm974 = vmor %vm972, %vm973
          %v975 = vsel %vm974, %v967, %v971
          %v976 = vand.u32 2147483647, %v966
          %vm977 = vcmp.eq.f32.partialorder %v976, 8.507059e+37
          %v978 = vand.u32 %v966, 2147483648
          %v979 = vor.u32 1.1754944e-38, %v978
          %v980 = vsel %vm977, %v979, %v975
          %v981 = vmul.f32 1.0, %v980
          %v982 = vld [vmem:[#allocation5] sm:$0xff]
          %984 = vset.pattern.permute.xlu0 0
          %985 = vperm.xlu0 %984, %v981
          %v986 = vpop.permute.xlu0 %985
          %v988 = vmul.f32 %v982, %v986
          %989 = vst.msk [vmem:[#allocation5] sm:$0xff] %vm589, %v988
          %v990 = vld [vmem:[%s722] sm:$0xff]
          %v991 = vrcp.pop %v990
          %v992 = vmul.f32 %v990, %v991
          %v993 = vsub.f32 1.0, %v992
          %v994 = vmul.f32 %v991, %v993
          %v995 = vadd.f32 %v991, %v994
          %vm996 = vweird.f32 %v990
          %vm997 = vweird.f32 %v991
          %vm998 = vmor %vm996, %vm997
          %v999 = vsel %vm998, %v991, %v995
          %v1000 = vand.u32 2147483647, %v990
          %vm1001 = vcmp.eq.f32.partialorder %v1000, 8.507059e+37
          %v1002 = vand.u32 %v990, 2147483648
          %v1003 = vor.u32 1.1754944e-38, %v1002
          %v1004 = vsel %vm1001, %v1003, %v999
          %v1005 = vmul.f32 1.0, %v1004
          %v1006 = vld [vmem:[#allocation5] sm:$0xff]
          %1008 = vset.pattern.permute.xlu0 0
          %1009 = vperm.xlu0 %1008, %v1005
          %v1010 = vpop.permute.xlu0 %1009
          %v1012 = vmul.f32 %v1006, %v1010
          %1013 = vst.msk [vmem:[#allocation5] sm:$0xff] %vm770, %v1012
          %v1014 = vld [vmem:[%s818] sm:$0xff]
          %v1015 = vrcp.pop %v1014
          %v1016 = vmul.f32 %v1014, %v1015
          %v1017 = vsub.f32 1.0, %v1016
          %v1018 = vmul.f32 %v1015, %v1017
          %v1019 = vadd.f32 %v1015, %v1018
          %vm1020 = vweird.f32 %v1014
          %vm1021 = vweird.f32 %v1015
          %vm1022 = vmor %vm1020, %vm1021
          %v1023 = vsel %vm1022, %v1015, %v1019
          %v1024 = vand.u32 2147483647, %v1014
          %vm1025 = vcmp.eq.f32.partialorder %v1024, 8.507059e+37
          %v1026 = vand.u32 %v1014, 2147483648
          %v1027 = vor.u32 1.1754944e-38, %v1026
          %v1028 = vsel %vm1025, %v1027, %v1023
          %v1029 = vmul.f32 1.0, %v1028
          %v1030 = vld [vmem:[#allocation5] sm:$0xff]
          %1032 = vset.pattern.permute.xlu0 0
          %1033 = vperm.xlu0 %1032, %v1029
          %v1034 = vpop.permute.xlu0 %1033
          %v1036 = vmul.f32 %v1030, %v1034
          %1037 = vst.msk [vmem:[#allocation5] sm:$0xff] %vm865, %v1036
          %v1038 = vld [vmem:[%s913] sm:$0xff]
          %v1039 = vrcp.pop %v1038
          %v1040 = vmul.f32 %v1038, %v1039
          %v1041 = vsub.f32 1.0, %v1040
          %v1042 = vmul.f32 %v1039, %v1041
          %v1043 = vadd.f32 %v1039, %v1042
          %vm1044 = vweird.f32 %v1038
          %vm1045 = vweird.f32 %v1039
          %vm1046 = vmor %vm1044, %vm1045
          %v1047 = vsel %vm1046, %v1039, %v1043
          %v1048 = vand.u32 2147483647, %v1038
          %vm1049 = vcmp.eq.f32.partialorder %v1048, 8.507059e+37
          %v1050 = vand.u32 %v1038, 2147483648
          %v1051 = vor.u32 1.1754944e-38, %v1050
          %v1052 = vsel %vm1049, %v1051, %v1047
          %v1053 = vmul.f32 1.0, %v1052
          %v1054 = vld [vmem:[#allocation5] sm:$0xff]
          %1056 = vset.pattern.permute.xlu0 0
          %1057 = vperm.xlu0 %1056, %v1053
          %v1058 = vpop.permute.xlu0 %1057
          %v1060 = vmul.f32 %v1054, %v1058
          %1061 = vst.msk [vmem:[#allocation5] sm:$0xff] %vm960, %v1060
          %v1062 = vld [vmem:[#allocation5] sm:$0xff]
          %v1063 = vld [vmem:[#allocation19] sm:$0xff]
          %v1064 = vld [vmem:[#allocation19 + $0x8] sm:$0xff]
          %v1065 = vld [vmem:[#allocation19 + $0x10] sm:$0xff]
          %v1066 = vld [vmem:[#allocation19 + $0x18] sm:$0xff]
          %v1068 = vsel %vm529, %v1062, 0
          %1070 = vmatpush.msra.mxu0 0.0
          %1071 = vmatpush.msra.mxu0 0.0
          %1072 = vmatpush.msra.mxu0 0.0
          %1073 = vmatpush.msra.mxu0 0.0
          %1074 = vmatpush.msra.mxu0 0.0
          %1075 = vmatpush.msra.mxu0 0.0
          %1076 = vmatpush.msra.mxu0 0.0
          %1077 = vmatpush.msra.mxu0 0.0
          %1078 = vmatpush.msra.mxu0 0.0
          %1079 = vmatpush.msra.mxu0 0.0
          %1080 = vmatpush.msra.mxu0 0.0
          %1081 = vmatpush.msra.mxu0 0.0
          %1082 = vmatpush.msra.mxu0 %v1066
          %1083 = vmatpush.msra.mxu0 %v1065
          %1084 = vmatpush.msra.mxu0 %v1064
          %1085 = vmatpush.msra.mxu0 %v1063
          %1086 = vmatmul.f32.gmra.mxu0 %v1068
          %v1087 = vpop.f32.mrf.mxu0
          %v1088 = vadd.f32 0.0, %v1087
          %1089 = vdwg.mxu0
          %1090 = vst.msk [vmem:[%s478] sm:$0xff] %vm529, %v1088
        $region84: #{tpu_custom_call.1} parent=47 // pred_fallthru
          _
        %s1091 = sand.u32 %s235, 1
        %s1092 = scalar_lea.sflag [#allocation10], %s1091
        %s1093 = sand.u32 %s235, 1
        %s1094 = smul.addr %s1093, 8
        %s1095 = scalar_lea.vmem [#allocation20], %s1094
        // Predicated region
        $region85: #{tpu_custom_call.1} parent=47 // pred_check
          %p1096 = pneg %p245
        $region86: #{tpu_custom_call.1} parent=47 // pred_check_branch
          %1098 = sbr.rel (%p1096) target = $region88
        $region87: #{tpu_custom_call.1} parent=47 // pred_region
          %1100 = vsyncadd %s1092, 0
          %s1101 = smul.addr %s43, 2
          %s1102 = sadd.s32 %s44, %s1101
          %s1103 = smul.addr %s1102, 8
          %s1104 = scalar_lea.hbm %s8, %s1103
          %s1106 = sshll.u32 %s1095, 4
          %s1107 = int_to_ptr.vmem [resolvable:$true] %s1106
          %s1108 = sshll.u32 %s1104, 4
          %s1109 = int_to_ptr.hbm [resolvable:$true] %s1108
          %1111 = dma.vmem_to_hbm [thread:$0]  %s1107, 128, %s1109, %s1092
        $region88: #{tpu_custom_call.1} parent=47 // pred_fallthru
          _
      $region48: #{tpu_custom_call.1} parent=5 // pred_fallthru
        _
      %p1112 = scmp.le.s32.totalorder 2, %s33
      // Predicated region
      $region89: #{tpu_custom_call.1} parent=5 // pred_check
        %p1113 = pneg %p1112
      $region90: #{tpu_custom_call.1} parent=5 // pred_check_branch
        %1115 = sbr.rel (%p1113) target = $region92
      $region91: #{tpu_custom_call.1} parent=5 // pred_region
        %s1116 = ssub.s32 %s33, 2
        // Predicated region
        $region93: #{tpu_custom_call.1} parent=91 // pred_check
          %p1117 = pneg %p251
        $region94: #{tpu_custom_call.1} parent=91 // pred_check_branch
          %1119 = sbr.rel (%p1117) target = $region96
        $region95: #{tpu_custom_call.1} parent=91 // pred_region
          %s1120 = sand.u32 %s236, 1
          %s1121 = scalar_lea.sflag [#allocation10], %s1120
          %s1122 = sand.u32 %s236, 1
          %s1123 = smul.addr %s1122, 8
          %s1124 = scalar_lea.vmem [#allocation20], %s1123
          %1126 = dma.done %s1121, 128
        $region96: #{tpu_custom_call.1} parent=91 // pred_fallthru
          _
      $region92: #{tpu_custom_call.1} parent=5 // pred_fallthru
        _
    $region6: #{tpu_custom_call.1} parent=1 // loop_footer
      %s37 = sadd.s32 1, %s33
    $region7: #{tpu_custom_call.1} parent=1 // loop_footer_branch
      %32 = sbr.rel target = $region3
    $region8: #{tpu_custom_call.1} parent=1 // loop_exit
      _
    %1127 = vsyncpa [#allocation9], 1
    %s1128 = scalar_lea.sflag [#allocation9], 1
    %1129 = vsyncpa %s1128, 1
    %1130 = vsyncpa [#allocation12], 1
    %s1131 = scalar_lea.sflag [#allocation12], 1
    %1132 = vsyncpa %s1131, 1
    %1133 = vsyncpa [#allocation15], 1
    %1134 = vsyncpa [#allocation18], 1
    %1135 = vsyncpa [#allocation10], 1
    %s1136 = scalar_lea.sflag [#allocation10], 1
    %1137 = vsyncpa %s1136, 1

</llo_original>
